<compile_context>
chip_gen: v6e
topology: v6e:2x2x1
jax: 0.10.0
libtpu: 0.0.40
codegen_flags: <defaults>
</compile_context>

<pallas_src>
import math
from functools import partial

import jax
import jax.numpy as jnp
from jax.experimental import pallas as pl
from jax.experimental.pallas import tpu as pltpu

MASK_VALUE = -1e30
VMEM_LIMIT = 32 * 1024 * 1024      # explicit scoped-VMEM budget (fits v5e/v6e/v7x)


def _pick_tile(dim, desired, step=128):
    """Largest multiple-of-`step` tile <= desired dividing dim, else the full dim."""
    if dim <= desired:
        return dim
    t = (desired // step) * step
    while t >= step:
        if dim % t == 0:
            return t
        t -= step
    return dim   # no clean divisor: one full-dim tile (may be large for odd shapes)


# ---------------------------------------------------------------------------
# Tiled matmul (no bias): out = x @ w   (fused QKV projection and o_proj)
# ---------------------------------------------------------------------------
def _matmul_kernel(x_ref, w_ref, o_ref, acc_ref):
    @pl.when(pl.program_id(2) == 0)
    def _init():
        acc_ref[...] = jnp.zeros(acc_ref.shape, acc_ref.dtype)

    acc_ref[...] += jnp.dot(x_ref[...], w_ref[...],
                            preferred_element_type=jnp.float32)

    @pl.when(pl.program_id(2) == pl.num_programs(2) - 1)
    def _finalize():
        o_ref[...] = acc_ref[...].astype(o_ref.dtype)


def pallas_matmul(x, w, *, out_dtype, tm=512, tn=512, tk=512):
    """x: (M, K), w: (K, N) -> (M, N), f32 accumulation."""
    M, K = x.shape
    _, N = w.shape
    tm = _pick_tile(M, tm)
    tn = _pick_tile(N, tn)
    tk = _pick_tile(K, tk)
    grid = (M // tm, N // tn, K // tk)
    return pl.pallas_call(
        _matmul_kernel,
        out_shape=jax.ShapeDtypeStruct((M, N), out_dtype),
        grid=grid,
        in_specs=[
            pl.BlockSpec((tm, tk), lambda i, j, k: (i, k)),
            pl.BlockSpec((tk, tn), lambda i, j, k: (k, j)),
        ],
        out_specs=pl.BlockSpec((tm, tn), lambda i, j, k: (i, j)),
        scratch_shapes=[pltpu.VMEM((tm, tn), jnp.float32)],
        compiler_params=pltpu.CompilerParams(
            dimension_semantics=("parallel", "parallel", "arbitrary"),
            vmem_limit_bytes=VMEM_LIMIT),
    )(x, w)


# ---------------------------------------------------------------------------
# Flash-style forgetting attention, head-packed, triangular grid.
# Grid: (batch, step) where step walks the lower-triangular (qi, ki) pairs
# (SMEM tables via scalar prefetch).  All heads of a (q_tile, kv_tile) pair are
# processed per step; scores / accumulator stay lane-dense.
# ---------------------------------------------------------------------------
def _fa_kernel(qi_ref, ki_ref, q_ref, k_ref, v_ref, nlam_ref, o_ref,
               m_sc, l_sc, acc_sc, *, num_heads, head_dim, compute_dtype,
               approx_recip):
    H, Dh = num_heads, head_dim
    D = H * Dh
    tq = q_ref.shape[1]
    tk = k_ref.shape[1]

    step = pl.program_id(1)
    qi = qi_ref[step]
    ki = ki_ref[step]
    is_diag = qi == ki

    @pl.when(ki == 0)
    def _init():
        m_sc[...] = jnp.full(m_sc.shape, MASK_VALUE, m_sc.dtype)
        l_sc[...] = jnp.zeros(l_sc.shape, l_sc.dtype)
        acc_sc[...] = jnp.zeros(acc_sc.shape, acc_sc.dtype)

    def _accumulate(masked):
        q = q_ref[0].astype(compute_dtype)          # (tq, D); sm_scale baked into q_w
        k = k_ref[0].astype(compute_dtype)          # (tk, D)
        v = v_ref[0].astype(compute_dtype)          # (tk, D)

        # Block-diagonal head-packing: row r of the slab belongs to head r // tk,
        # column c to head c // Dh; off-head blocks are zeroed.  One 128-deep MXU
        # pass then yields all heads' scores and one PV pass a lane-dense (tq, D).
        zero = jnp.zeros((), compute_dtype)
        rep_mask = (jax.lax.broadcasted_iota(jnp.int32, (H * tk, D), 0) // tk ==
                    jax.lax.broadcasted_iota(jnp.int32, (H * tk, D), 1) // Dh)
        k_rep = jnp.where(rep_mask, jnp.tile(k, (H, 1)), zero)   # (H*tk, D)
        v_rep = jnp.where(rep_mask, jnp.tile(v, (H, 1)), zero)   # (H*tk, D)

        s_all = jax.lax.dot_general(q, k_rep, (((1,), (1,)), ((), ())),
                                    preferred_element_type=jnp.float32)  # (tq, H*tk)
        # decay bias: +lam_q is constant along the softmax axis (cancels); only the
        # per-key -lam_k row (packed outside the kernel) is added.
        logits = s_all + nlam_ref[0, 0]

        if masked:   # causal mask only needed on the diagonal kv tile
            cmask = (jax.lax.broadcasted_iota(jnp.int32, (tq, tk), 1) <=
                     jax.lax.broadcasted_iota(jnp.int32, (tq, tk), 0))

        # per-head online-softmax stats; column slices sit on 128-lane boundaries
        logit_parts = []
        for h in range(H):
            lh = logits[:, h * tk:(h + 1) * tk]
            if masked:
                lh = jnp.where(cmask, lh, MASK_VALUE)
            logit_parts.append(lh)

        row_max = jnp.concatenate(
            [jnp.max(lh, axis=-1, keepdims=True) for lh in logit_parts], axis=-1)
        m_prev = m_sc[...]                           # (tq, H)
        m_new = jnp.maximum(m_prev, row_max)
        alpha = jnp.exp(m_prev - m_new)              # (tq, H)

        p_parts = [jnp.exp(lh - m_new[:, h:h + 1])
                   for h, lh in enumerate(logit_parts)]
        row_sum = jnp.concatenate(
            [jnp.sum(p, axis=-1, keepdims=True) for p in p_parts], axis=-1)
        l_sc[...] = alpha * l_sc[...] + row_sum
        m_sc[...] = m_new

        p_all = jnp.concatenate(p_parts, axis=-1).astype(compute_dtype)  # (tq, H*tk)
        pv = jax.lax.dot_general(p_all, v_rep, (((1,), (0,)), ((), ())),
                                 preferred_element_type=jnp.float32)     # (tq, D)
        alpha_full = jnp.concatenate(
            [jnp.broadcast_to(alpha[:, h:h + 1], (tq, Dh)) for h in range(H)],
            axis=-1)                                                      # (tq, D)
        acc_sc[...] = alpha_full * acc_sc[...] + pv

    @pl.when(jnp.logical_not(is_diag))
    def _off_diag():
        _accumulate(masked=False)

    @pl.when(is_diag)    # diagonal tile is the last kv step for this q tile
    def _diag_and_finalize():
        _accumulate(masked=True)
        inv_l = pl.reciprocal(l_sc[...], approx=approx_recip)             # (tq, H)
        inv_full = jnp.concatenate(
            [jnp.broadcast_to(inv_l[:, h:h + 1], (tq, Dh)) for h in range(H)],
            axis=-1)
        o_ref[0] = (acc_sc[...] * inv_full).astype(o_ref.dtype)


def forgetting_attention_pallas(qkv, neg_lam_packed, *, num_heads, head_dim, tq,
                                compute_dtype, approx_recip, out_dtype):
    """qkv: (B, T, 3*D) with columns [q | k | v] (q pre-scaled);
       neg_lam_packed: (B, nq, 1, H*tq) with [b, ki, 0, h*tq+s] = -lam[b, ki*tq+s, h].
       Returns (B, T, D) with head-major (h d) column order."""
    B, T, _ = qkv.shape
    D = num_heads * head_dim
    assert T % tq == 0
    nq = T // tq

    # flattened lower-triangular (qi, ki) schedule: nq*(nq+1)/2 useful steps only
    pairs = [(qi, ki) for qi in range(nq) for ki in range(qi + 1)]
    qi_tab = jnp.asarray([p[0] for p in pairs], jnp.int32)
    ki_tab = jnp.asarray([p[1] for p in pairs], jnp.int32)
    n_steps = len(pairs)

    kern = partial(_fa_kernel, num_heads=num_heads, head_dim=head_dim,
                   compute_dtype=compute_dtype, approx_recip=approx_recip)

    grid_spec = pltpu.PrefetchScalarGridSpec(
        num_scalar_prefetch=2,
        grid=(B, n_steps),
        in_specs=[
            pl.BlockSpec((1, tq, D), lambda b, s, qt, kt: (b, qt[s], 0)),   # q cols
            pl.BlockSpec((1, tq, D), lambda b, s, qt, kt: (b, kt[s], 1)),   # k cols
            pl.BlockSpec((1, tq, D), lambda b, s, qt, kt: (b, kt[s], 2)),   # v cols
            pl.BlockSpec((1, 1, 1, num_heads * tq),
                         lambda b, s, qt, kt: (b, kt[s], 0, 0)),            # -lam_k row
        ],
        out_specs=pl.BlockSpec((1, tq, D), lambda b, s, qt, kt: (b, qt[s], 0)),
        scratch_shapes=[
            pltpu.VMEM((tq, num_heads), jnp.float32),   # running max (per head)
            pltpu.VMEM((tq, num_heads), jnp.float32),   # running denom
            pltpu.VMEM((tq, D), jnp.float32),           # running numerator (lane-dense)
        ],
    )
    return pl.pallas_call(
        kern,
        out_shape=jax.ShapeDtypeStruct((B, T, D), out_dtype),
        grid_spec=grid_spec,
        compiler_params=pltpu.CompilerParams(
            dimension_semantics=("parallel", "arbitrary"),
            vmem_limit_bytes=VMEM_LIMIT),
    )(qi_tab, ki_tab, qkv, qkv, qkv, neg_lam_packed)


# ---------------------------------------------------------------------------
# Full layer forward
# ---------------------------------------------------------------------------
def forgetting_attention_layer_forward(hidden_states, params, num_heads, *,
                                       compute_dtype=jnp.bfloat16,
                                       approx_recip=True, tq=128):
    B, T, D = hidden_states.shape
    H = num_heads
    Dh = D // H
    sm_scale = 1.0 / math.sqrt(Dh)
    tq = tq if T % tq == 0 else T
    nq = T // tq

    x2d = hidden_states.reshape(B * T, D)

    # Fused q/k/v projection: x read once; sm_scale folded into the q weights;
    # MXU operands and outputs in compute_dtype (f32 accumulate) so the attention
    # kernel never re-casts / re-scales in its hot loop.
    w_qkv = jnp.concatenate(
        [params["q_w"].T * sm_scale, params["k_w"].T, params["v_w"].T], axis=1)
    qkv = pallas_matmul(x2d.astype(compute_dtype), w_qkv.astype(compute_dtype),
                        out_dtype=compute_dtype).reshape(B, T, 3 * D)

    # Forget gate has only H output columns: plain XLA matmul is cheaper than padding
    # a 128-lane block into the fused projection at small D.  lam path stays f32.
    fgate_logit = (hidden_states.astype(jnp.float32)
                   @ params["fgate_w"].T.astype(jnp.float32) + params["fgate_b"])
    lam = jnp.cumsum(jax.nn.log_sigmoid(fgate_logit), axis=1)            # (B, T, H)

    # +lam_q is constant along the softmax axis -> cancels; pack only -lam_k per
    # kv tile as one (1, H*tk) row the kernel adds to the packed score matrix.
    neg_lam = -jnp.transpose(lam.reshape(B, nq, tq, H), (0, 1, 3, 2))
    neg_lam = neg_lam.reshape(B, nq, 1, H * tq)

    o = forgetting_attention_pallas(
        qkv, neg_lam, num_heads=H, head_dim=Dh, tq=tq,
        compute_dtype=compute_dtype, approx_recip=approx_recip,
        out_dtype=compute_dtype)                                          # (B, T, D)

    out = pallas_matmul(o.reshape(B * T, D),
                        params["o_w"].T.astype(compute_dtype),
                        out_dtype=jnp.float32).reshape(B, T, D)
    return out


# ---------------------------------------------------------------------------
# Pure-JAX reference (mirrors the PyTorch forward semantics, full lam_i - lam_j bias)
# ---------------------------------------------------------------------------
def reference_forward(hidden_states, params, num_heads):
    B, T, D = hidden_states.shape
    head_dim = D // num_heads
    scale = 1.0 / math.sqrt(head_dim)
    x = hidden_states.astype(jnp.float32)

    q = x @ params["q_w"].T
    k = x @ params["k_w"].T
    v = x @ params["v_w"].T
    fgate_logit = x @ params["fgate_w"].T + params["fgate_b"]        # (B, T, H)
    log_fgate = jax.nn.log_sigmoid(fgate_logit).transpose(0, 2, 1)   # (B, H, T)

    q = q.reshape(B, T, num_heads, head_dim).transpose(0, 2, 1, 3)
    k = k.reshape(B, T, num_heads, head_dim).transpose(0, 2, 1, 3)
    v = v.reshape(B, T, num_heads, head_dim).transpose(0, 2, 1, 3)

    lam = jnp.cumsum(log_fgate, axis=-1)                             # (B, H, T)
    bias = lam[..., :, None] - lam[..., None, :]                     # (B, H, T, T)
    scores = jnp.einsum("bhtd,bhsd->bhts", q, k) * scale
    causal = jnp.tril(jnp.ones((T, T), bool))
    logits = jnp.where(causal, scores + bias, -jnp.inf)
    attn = jax.nn.softmax(logits, axis=-1)
    o = jnp.einsum("bhts,bhsd->bhtd", attn, v)
    o = o.transpose(0, 2, 1, 3).reshape(B, T, D)
    return o @ params["o_w"].T


# ---------------------------------------------------------------------------
if __name__ == "__main__":
    B, T = 2, 256                      # T > 128 so the triangular flash tiling runs
    hidden_size, num_heads = 128, 4
    init_std = 0.02

    key = jax.random.PRNGKey(0)
    k_x, k_q, k_k, k_v, k_o, k_f = jax.random.split(key, 6)

    hidden_states = jax.random.normal(k_x, (B, T, hidden_size), jnp.float32)

    # PyTorch nn.Linear weight layout: (out_features, in_features); init N(0, 0.02), bias=0.
    params = {
        "q_w": jax.random.normal(k_q, (hidden_size, hidden_size), jnp.float32) * init_std,
        "k_w": jax.random.normal(k_k, (hidden_size, hidden_size), jnp.float32) * init_std,
        "v_w": jax.random.normal(k_v, (hidden_size, hidden_size), jnp.float32) * init_std,
        "o_w": jax.random.normal(k_o, (hidden_size, hidden_size), jnp.float32) * init_std,
        "fgate_w": jax.random.normal(k_f, (num_heads, hidden_size), jnp.float32) * init_std,
        "fgate_b": jnp.zeros((num_heads,), jnp.float32),
    }

    ref = reference_forward(hidden_states, params, num_heads)

    # bf16 MXU operands (default, v6e/v7x-oriented), f32 softmax math, approx reciprocal
    out_bf16 = forgetting_attention_layer_forward(hidden_states, params, num_heads)
    out_bf16 = jax.block_until_ready(out_bf16)
    assert out_bf16.shape == (B, T, hidden_size)
    err_bf16 = float(jnp.max(jnp.abs(out_bf16 - ref)))
    assert jnp.allclose(out_bf16, ref, rtol=1e-1, atol=1e-2), err_bf16

    # strict f32 path (exact semantics check)
    out_f32 = forgetting_attention_layer_forward(
        hidden_states, params, num_heads,
        compute_dtype=jnp.float32, approx_recip=False)
    out_f32 = jax.block_until_ready(out_f32)
    err_f32 = float(jnp.max(jnp.abs(out_f32 - ref)))
    assert jnp.allclose(out_f32, ref, rtol=1e-3, atol=5e-4), err_f32

    print("KERNEL_OK")
</pallas_src>

<mosaic_0001>
module attributes {stable_mosaic.version = 11 : i64} {
  func.func @_matmul_kernel(%arg0: i32, %arg1: i32, %arg2: i32, %arg3: memref<512x128xbf16, #tpu.memory_space<vmem>>, %arg4: memref<128x384xbf16, #tpu.memory_space<vmem>>, %arg5: memref<512x384xbf16, #tpu.memory_space<vmem>>, %arg6: memref<512x384xf32, #tpu.memory_space<vmem>>) attributes {dimension_semantics = [#tpu.dimension_semantics<parallel>, #tpu.dimension_semantics<parallel>, #tpu.dimension_semantics<arbitrary>], iteration_bounds = array<i64: 1, 1, 1>, scalar_prefetch = 0 : i64, scratch_operands = 1 : i64, tpu.core_type = #tpu.core_type<tc>, window_params = [{transform_indices = @transform_0, window_bounds = array<i64: 512, 128>}, {transform_indices = @transform_1, window_bounds = array<i64: 128, 384>}, {transform_indices = @transform_2, window_bounds = array<i64: 512, 384>}]} {
    %c0_i32 = arith.constant 0 : i32
    %0 = arith.cmpi eq, %arg2, %c0_i32 : i32
    %1 = arith.extui %0 : i1 to i32
    %c0_i32_0 = arith.constant 0 : i32
    %2 = arith.cmpi ne, %1, %c0_i32_0 : i32
    scf.if %2 {
      %cst_10 = arith.constant 0.000000e+00 : f32
      %12 = vector.broadcast %cst_10 : f32 to vector<512x384xf32>
      %c0_11 = arith.constant 0 : index
      %c0_12 = arith.constant 0 : index
      %13 = vector.load %arg6[%c0_11, %c0_12] : memref<512x384xf32, #tpu.memory_space<vmem>>, vector<512x384xf32>
      tpu.vector_store %arg6[%c0_11, %c0_12], %12 {strides = array<i32>} : memref<512x384xf32, #tpu.memory_space<vmem>>, vector<512x384xf32>,
    } else {
    }
    %c0 = arith.constant 0 : index
    %c0_1 = arith.constant 0 : index
    %3 = vector.load %arg6[%c0, %c0_1] : memref<512x384xf32, #tpu.memory_space<vmem>>, vector<512x384xf32>
    %c0_2 = arith.constant 0 : index
    %c0_3 = arith.constant 0 : index
    %4 = vector.load %arg3[%c0_2, %c0_3] : memref<512x128xbf16, #tpu.memory_space<vmem>>, vector<512x128xbf16>
    %c0_4 = arith.constant 0 : index
    %c0_5 = arith.constant 0 : index
    %5 = vector.load %arg4[%c0_4, %c0_5] : memref<128x384xbf16, #tpu.memory_space<vmem>>, vector<128x384xbf16>
    %cst = arith.constant dense<0.000000e+00> : vector<512x384xf32>
    %6 = tpu.matmul %4, %5, %cst {dimension_numbers = #tpu.dot_dimension_numbers<[1], [0], [0], [1], [0, 0, 1, 1], [], []>} : vector<512x128xbf16>, vector<128x384xbf16>, vector<512x384xf32> -> vector<512x384xf32>
    %7 = arith.addf %3, %6 : vector<512x384xf32>
    %c0_6 = arith.constant 0 : index
    %c0_7 = arith.constant 0 : index
    %8 = vector.load %arg6[%c0_6, %c0_7] : memref<512x384xf32, #tpu.memory_space<vmem>>, vector<512x384xf32>
    tpu.vector_store %arg6[%c0_6, %c0_7], %7 {strides = array<i32>} : memref<512x384xf32, #tpu.memory_space<vmem>>, vector<512x384xf32>,
    %c0_i32_8 = arith.constant 0 : i32
    %9 = arith.cmpi eq, %arg2, %c0_i32_8 : i32
    %10 = arith.extui %9 : i1 to i32
    %c0_i32_9 = arith.constant 0 : i32
    %11 = arith.cmpi ne, %10, %c0_i32_9 : i32
    scf.if %11 {
      %c0_10 = arith.constant 0 : index
      %c0_11 = arith.constant 0 : index
      %12 = vector.load %arg6[%c0_10, %c0_11] : memref<512x384xf32, #tpu.memory_space<vmem>>, vector<512x384xf32>
      %13 = arith.truncf %12 : vector<512x384xf32> to vector<512x384xbf16>
      %c0_12 = arith.constant 0 : index
      %c0_13 = arith.constant 0 : index
      %14 = vector.load %arg5[%c0_12, %c0_13] : memref<512x384xbf16, #tpu.memory_space<vmem>>, vector<512x384xbf16>
      tpu.vector_store %arg5[%c0_12, %c0_13], %13 {strides = array<i32>} : memref<512x384xbf16, #tpu.memory_space<vmem>>, vector<512x384xbf16>,
    } else {
    }
    return
  }
  func.func @transform_0(%arg0: i32, %arg1: i32, %arg2: i32) -> (i32, i32) {
    %c0_i32 = arith.constant 0 : i32
    return %arg0, %arg2 : i32, i32
  }
  func.func @transform_1(%arg0: i32, %arg1: i32, %arg2: i32) -> (i32, i32) {
    %c0_i32 = arith.constant 0 : i32
    return %arg2, %arg1 : i32, i32
  }
  func.func @transform_2(%arg0: i32, %arg1: i32, %arg2: i32) -> (i32, i32) {
    %c0_i32 = arith.constant 0 : i32
    return %arg0, %arg1 : i32, i32
  }
}

</mosaic_0001>

<llo_original>
// kernel: tpu_custom_call.1
$region0: #{tpu_custom_call.1}
  #allocation0 [shape = 'u32[]', space=smem, size = 0x4, offset = 0x4, fixed_abs, tag = 'smem constant byte address 0x4 - core index']
  #allocation1 [shape = 'u32[144,128]{1,0:T(1,128)}', space=vmem, size = 0x12000, scoped, tag = 'internal scratch']
  #allocation2 [shape = 'f32[512,384]{1,0:T(8,128)}', space=vmem, size = 0xc0000, scoped, tag = 'scratch operand']
  %s0 = inlined_call_operand.hbm [shape: bf16[512,128], index: 0, kind: input, shape index: {}]
  %s1 = inlined_call_operand.hbm [shape: bf16[128,384], index: 1, kind: input, shape index: {}]
  %s2 = inlined_call_operand.hbm [shape: bf16[512,384], index: 2, kind: output, shape index: {}]
  %s3 = sld [smem:[#allocation0]]
  $region34: #{tpu_custom_call.1} parent=0
    _
  %s5 = ssub.s32 1, %s3
  %s6 = scalar_select 0, %s5, %s3
  $region1: #{tpu_custom_call.1} parent=0
    #allocation3 [shape = 'u8[131072]{0}', space=vmem, size = 0x20000, scoped, tag = 'input window, operand 0, single buffered']
    #allocation4 [shape = 's32[1]{0}', space=sflag, size = 0x4, scoped, tag = 'scoped memory for tpu_custom_call.1']
    #allocation5 [shape = 's32[1]{0}', space=sflag, size = 0x4, scoped, tag = 'scoped memory for tpu_custom_call.1']
    #allocation6 [shape = 'u8[98304]{0}', space=vmem, size = 0x18000, scoped, tag = 'input window, operand 1, single buffered']
    #allocation7 [shape = 's32[1]{0}', space=sflag, size = 0x4, scoped, tag = 'scoped memory for tpu_custom_call.1']
    #allocation8 [shape = 'u8[393216]{0}', space=vmem, size = 0x60000, scoped, tag = 'output window, operand 0, single buffered']
    %7 = vsyncpa [#allocation4], 0
    %8 = vsyncpa [#allocation7], 0
    %9 = vsyncpa [#allocation5], 0
    // Predicated region
    $region2: #{tpu_custom_call.1} parent=1 // pred_check
      _
    $region3: #{tpu_custom_call.1} parent=1 // pred_check_branch
      %11 = sbr.rel (0) target = $region5
    $region4: #{tpu_custom_call.1} parent=1 // pred_region
      %s13 = ssub.s32 4096, 4096
      %14 = vsyncadd [#allocation4], %s13
      %s15 = sshll.u32 [#allocation3], 4
      %s16 = int_to_ptr.vmem [resolvable:$true] %s15
      %21 = dma.hbm_to_vmem [thread:$0]  %s0, 4096, %s16, [#allocation4], 64, 64, 4
    $region5: #{tpu_custom_call.1} parent=1 // pred_fallthru
      _
    // Predicated region
    $region6: #{tpu_custom_call.1} parent=1 // pred_check
      _
    $region7: #{tpu_custom_call.1} parent=1 // pred_check_branch
      %23 = sbr.rel (0) target = $region9
    $region8: #{tpu_custom_call.1} parent=1 // pred_region
      %s25 = ssub.s32 3072, 3072
      %26 = vsyncadd [#allocation7], %s25
      %s27 = sshll.u32 [#allocation6], 4
      %s28 = int_to_ptr.vmem [resolvable:$true] %s27
      %33 = dma.hbm_to_vmem [thread:$0]  %s1, 3072, %s28, [#allocation7], 192, 192, 12
    $region9: #{tpu_custom_call.1} parent=1 // pred_fallthru
      _
    // Predicated region
    $region10: #{tpu_custom_call.1} parent=1 // pred_check
      _
    $region11: #{tpu_custom_call.1} parent=1 // pred_check_branch
      %35 = sbr.rel (0) target = $region13
    $region12: #{tpu_custom_call.1} parent=1 // pred_region
      %36 = dma.done [#allocation4], 4096
    $region13: #{tpu_custom_call.1} parent=1 // pred_fallthru
      _
    // Predicated region
    $region14: #{tpu_custom_call.1} parent=1 // pred_check
      _
    $region15: #{tpu_custom_call.1} parent=1 // pred_check_branch
      %38 = sbr.rel (0) target = $region17
    $region16: #{tpu_custom_call.1} parent=1 // pred_region
      %39 = dma.done [#allocation7], 3072
    $region17: #{tpu_custom_call.1} parent=1 // pred_fallthru
      _
    %p41 = scmp.eq.s32.totalorder 0, 0
    // Predicated region
    $region18: #{tpu_custom_call.1} parent=1 // pred_check
      %p42 = pneg %p41
    $region19: #{tpu_custom_call.1} parent=1 // pred_check_branch
      %44 = sbr.rel (%p42) target = $region21
    $region20: #{tpu_custom_call.1} parent=1 // pred_region
      %45 = vst [vmem:[#allocation2] sm:$0xff] 0.0
      %46 = vst [vmem:[#allocation2 + $0x8] sm:$0xff] 0.0
      %47 = vst [vmem:[#allocation2 + $0x10] sm:$0xff] 0.0
      %48 = vst [vmem:[#allocation2 + $0x18] sm:$0xff] 0.0
      %49 = vst [vmem:[#allocation2 + $0x20] sm:$0xff] 0.0
      %50 = vst [vmem:[#allocation2 + $0x28] sm:$0xff] 0.0
      %51 = vst [vmem:[#allocation2 + $0x30] sm:$0xff] 0.0
      %52 = vst [vmem:[#allocation2 + $0x38] sm:$0xff] 0.0
      %53 = vst [vmem:[#allocation2 + $0x40] sm:$0xff] 0.0
      %54 = vst [vmem:[#allocation2 + $0x48] sm:$0xff] 0.0
      %55 = vst [vmem:[#allocation2 + $0x50] sm:$0xff] 0.0
      %56 = vst [vmem:[#allocation2 + $0x58] sm:$0xff] 0.0
      %57 = vst [vmem:[#allocation2 + $0x60] sm:$0xff] 0.0
      %58 = vst [vmem:[#allocation2 + $0x68] sm:$0xff] 0.0
      %59 = vst [vmem:[#allocation2 + $0x70] sm:$0xff] 0.0
      %60 = vst [vmem:[#allocation2 + $0x78] sm:$0xff] 0.0
      %61 = vst [vmem:[#allocation2 + $0x80] sm:$0xff] 0.0
      %62 = vst [vmem:[#allocation2 + $0x88] sm:$0xff] 0.0
      %63 = vst [vmem:[#allocation2 + $0x90] sm:$0xff] 0.0
      %64 = vst [vmem:[#allocation2 + $0x98] sm:$0xff] 0.0
      %65 = vst [vmem:[#allocation2 + $0xa0] sm:$0xff] 0.0
      %66 = vst [vmem:[#allocation2 + $0xa8] sm:$0xff] 0.0
      %67 = vst [vmem:[#allocation2 + $0xb0] sm:$0xff] 0.0
      %68 = vst [vmem:[#allocation2 + $0xb8] sm:$0xff] 0.0
      %69 = vst [vmem:[#allocation2 + $0xc0] sm:$0xff] 0.0
      %70 = vst [vmem:[#allocation2 + $0xc8] sm:$0xff] 0.0
      %71 = vst [vmem:[#allocation2 + $0xd0] sm:$0xff] 0.0
      %72 = vst [vmem:[#allocation2 + $0xd8] sm:$0xff] 0.0
      %73 = vst [vmem:[#allocation2 + $0xe0] sm:$0xff] 0.0
      %74 = vst [vmem:[#allocation2 + $0xe8] sm:$0xff] 0.0
      %75 = vst [vmem:[#allocation2 + $0xf0] sm:$0xff] 0.0
      %76 = vst [vmem:[#allocation2 + $0xf8] sm:$0xff] 0.0
      %77 = vst [vmem:[#allocation2 + $0x100] sm:$0xff] 0.0
      %78 = vst [vmem:[#allocation2 + $0x108] sm:$0xff] 0.0
      %79 = vst [vmem:[#allocation2 + $0x110] sm:$0xff] 0.0
      %80 = vst [vmem:[#allocation2 + $0x118] sm:$0xff] 0.0
      %81 = vst [vmem:[#allocation2 + $0x120] sm:$0xff] 0.0
      %82 = vst [vmem:[#allocation2 + $0x128] sm:$0xff] 0.0
      %83 = vst [vmem:[#allocation2 + $0x130] sm:$0xff] 0.0
      %84 = vst [vmem:[#allocation2 + $0x138] sm:$0xff] 0.0
      %85 = vst [vmem:[#allocation2 + $0x140] sm:$0xff] 0.0
      %86 = vst [vmem:[#allocation2 + $0x148] sm:$0xff] 0.0
      %87 = vst [vmem:[#allocation2 + $0x150] sm:$0xff] 0.0
      %88 = vst [vmem:[#allocation2 + $0x158] sm:$0xff] 0.0
      %89 = vst [vmem:[#allocation2 + $0x160] sm:$0xff] 0.0
      %90 = vst [vmem:[#allocation2 + $0x168] sm:$0xff] 0.0
      %91 = vst [vmem:[#allocation2 + $0x170] sm:$0xff] 0.0
      %92 = vst [vmem:[#allocation2 + $0x178] sm:$0xff] 0.0
      %93 = vst [vmem:[#allocation2 + $0x180] sm:$0xff] 0.0
      %94 = vst [vmem:[#allocation2 + $0x188] sm:$0xff] 0.0
      %95 = vst [vmem:[#allocation2 + $0x190] sm:$0xff] 0.0
      %96 = vst [vmem:[#allocation2 + $0x198] sm:$0xff] 0.0
      %97 = vst [vmem:[#allocation2 + $0x1a0] sm:$0xff] 0.0
      %98 = vst [vmem:[#allocation2 + $0x1a8] sm:$0xff] 0.0
      %99 = vst [vmem:[#allocation2 + $0x1b0] sm:$0xff] 0.0
      %100 = vst [vmem:[#allocation2 + $0x1b8] sm:$0xff] 0.0
      %101 = vst [vmem:[#allocation2 + $0x1c0] sm:$0xff] 0.0
      %102 = vst [vmem:[#allocation2 + $0x1c8] sm:$0xff] 0.0
      %103 = vst [vmem:[#allocation2 + $0x1d0] sm:$0xff] 0.0
      %104 = vst [vmem:[#allocation2 + $0x1d8] sm:$0xff] 0.0
      %105 = vst [vmem:[#allocation2 + $0x1e0] sm:$0xff] 0.0
      %106 = vst [vmem:[#allocation2 + $0x1e8] sm:$0xff] 0.0
      %107 = vst [vmem:[#allocation2 + $0x1f0] sm:$0xff] 0.0
      %108 = vst [vmem:[#allocation2 + $0x1f8] sm:$0xff] 0.0
      %109 = vst [vmem:[#allocation2 + $0x200] sm:$0xff] 0.0
      %110 = vst [vmem:[#allocation2 + $0x208] sm:$0xff] 0.0
      %111 = vst [vmem:[#allocation2 + $0x210] sm:$0xff] 0.0
      %112 = vst [vmem:[#allocation2 + $0x218] sm:$0xff] 0.0
      %113 = vst [vmem:[#allocation2 + $0x220] sm:$0xff] 0.0
      %114 = vst [vmem:[#allocation2 + $0x228] sm:$0xff] 0.0
      %115 = vst [vmem:[#allocation2 + $0x230] sm:$0xff] 0.0
      %116 = vst [vmem:[#allocation2 + $0x238] sm:$0xff] 0.0
      %117 = vst [vmem:[#allocation2 + $0x240] sm:$0xff] 0.0
      %118 = vst [vmem:[#allocation2 + $0x248] sm:$0xff] 0.0
      %119 = vst [vmem:[#allocation2 + $0x250] sm:$0xff] 0.0
      %120 = vst [vmem:[#allocation2 + $0x258] sm:$0xff] 0.0
      %121 = vst [vmem:[#allocation2 + $0x260] sm:$0xff] 0.0
      %122 = vst [vmem:[#allocation2 + $0x268] sm:$0xff] 0.0
      %123 = vst [vmem:[#allocation2 + $0x270] sm:$0xff] 0.0
      %124 = vst [vmem:[#allocation2 + $0x278] sm:$0xff] 0.0
      %125 = vst [vmem:[#allocation2 + $0x280] sm:$0xff] 0.0
      %126 = vst [vmem:[#allocation2 + $0x288] sm:$0xff] 0.0
      %127 = vst [vmem:[#allocation2 + $0x290] sm:$0xff] 0.0
      %128 = vst [vmem:[#allocation2 + $0x298] sm:$0xff] 0.0
      %129 = vst [vmem:[#allocation2 + $0x2a0] sm:$0xff] 0.0
      %130 = vst [vmem:[#allocation2 + $0x2a8] sm:$0xff] 0.0
      %131 = vst [vmem:[#allocation2 + $0x2b0] sm:$0xff] 0.0
      %132 = vst [vmem:[#allocation2 + $0x2b8] sm:$0xff] 0.0
      %133 = vst [vmem:[#allocation2 + $0x2c0] sm:$0xff] 0.0
      %134 = vst [vmem:[#allocation2 + $0x2c8] sm:$0xff] 0.0
      %135 = vst [vmem:[#allocation2 + $0x2d0] sm:$0xff] 0.0
      %136 = vst [vmem:[#allocation2 + $0x2d8] sm:$0xff] 0.0
      %137 = vst [vmem:[#allocation2 + $0x2e0] sm:$0xff] 0.0
      %138 = vst [vmem:[#allocation2 + $0x2e8] sm:$0xff] 0.0
      %139 = vst [vmem:[#allocation2 + $0x2f0] sm:$0xff] 0.0
      %140 = vst [vmem:[#allocation2 + $0x2f8] sm:$0xff] 0.0
      %141 = vst [vmem:[#allocation2 + $0x300] sm:$0xff] 0.0
      %142 = vst [vmem:[#allocation2 + $0x308] sm:$0xff] 0.0
      %143 = vst [vmem:[#allocation2 + $0x310] sm:$0xff] 0.0
      %144 = vst [vmem:[#allocation2 + $0x318] sm:$0xff] 0.0
      %145 = vst [vmem:[#allocation2 + $0x320] sm:$0xff] 0.0
      %146 = vst [vmem:[#allocation2 + $0x328] sm:$0xff] 0.0
      %147 = vst [vmem:[#allocation2 + $0x330] sm:$0xff] 0.0
      %148 = vst [vmem:[#allocation2 + $0x338] sm:$0xff] 0.0
      %149 = vst [vmem:[#allocation2 + $0x340] sm:$0xff] 0.0
      %150 = vst [vmem:[#allocation2 + $0x348] sm:$0xff] 0.0
      %151 = vst [vmem:[#allocation2 + $0x350] sm:$0xff] 0.0
      %152 = vst [vmem:[#allocation2 + $0x358] sm:$0xff] 0.0
      %153 = vst [vmem:[#allocation2 + $0x360] sm:$0xff] 0.0
      %154 = vst [vmem:[#allocation2 + $0x368] sm:$0xff] 0.0
      %155 = vst [vmem:[#allocation2 + $0x370] sm:$0xff] 0.0
      %156 = vst [vmem:[#allocation2 + $0x378] sm:$0xff] 0.0
      %157 = vst [vmem:[#allocation2 + $0x380] sm:$0xff] 0.0
      %158 = vst [vmem:[#allocation2 + $0x388] sm:$0xff] 0.0
      %159 = vst [vmem:[#allocation2 + $0x390] sm:$0xff] 0.0
      %160 = vst [vmem:[#allocation2 + $0x398] sm:$0xff] 0.0
      %161 = vst [vmem:[#allocation2 + $0x3a0] sm:$0xff] 0.0
      %162 = vst [vmem:[#allocation2 + $0x3a8] sm:$0xff] 0.0
      %163 = vst [vmem:[#allocation2 + $0x3b0] sm:$0xff] 0.0
      %164 = vst [vmem:[#allocation2 + $0x3b8] sm:$0xff] 0.0
      %165 = vst [vmem:[#allocation2 + $0x3c0] sm:$0xff] 0.0
      %166 = vst [vmem:[#allocation2 + $0x3c8] sm:$0xff] 0.0
      %167 = vst [vmem:[#allocation2 + $0x3d0] sm:$0xff] 0.0
      %168 = vst [vmem:[#allocation2 + $0x3d8] sm:$0xff] 0.0
      %169 = vst [vmem:[#allocation2 + $0x3e0] sm:$0xff] 0.0
      %170 = vst [vmem:[#allocation2 + $0x3e8] sm:$0xff] 0.0
      %171 = vst [vmem:[#allocation2 + $0x3f0] sm:$0xff] 0.0
      %172 = vst [vmem:[#allocation2 + $0x3f8] sm:$0xff] 0.0
      %173 = vst [vmem:[#allocation2 + $0x400] sm:$0xff] 0.0
      %174 = vst [vmem:[#allocation2 + $0x408] sm:$0xff] 0.0
      %175 = vst [vmem:[#allocation2 + $0x410] sm:$0xff] 0.0
      %176 = vst [vmem:[#allocation2 + $0x418] sm:$0xff] 0.0
      %177 = vst [vmem:[#allocation2 + $0x420] sm:$0xff] 0.0
      %178 = vst [vmem:[#allocation2 + $0x428] sm:$0xff] 0.0
      %179 = vst [vmem:[#allocation2 + $0x430] sm:$0xff] 0.0
      %180 = vst [vmem:[#allocation2 + $0x438] sm:$0xff] 0.0
      %181 = vst [vmem:[#allocation2 + $0x440] sm:$0xff] 0.0
      %182 = vst [vmem:[#allocation2 + $0x448] sm:$0xff] 0.0
      %183 = vst [vmem:[#allocation2 + $0x450] sm:$0xff] 0.0
      %184 = vst [vmem:[#allocation2 + $0x458] sm:$0xff] 0.0
      %185 = vst [vmem:[#allocation2 + $0x460] sm:$0xff] 0.0
      %186 = vst [vmem:[#allocation2 + $0x468] sm:$0xff] 0.0
      %187 = vst [vmem:[#allocation2 + $0x470] sm:$0xff] 0.0
      %188 = vst [vmem:[#allocation2 + $0x478] sm:$0xff] 0.0
      %189 = vst [vmem:[#allocation2 + $0x480] sm:$0xff] 0.0
      %190 = vst [vmem:[#allocation2 + $0x488] sm:$0xff] 0.0
      %191 = vst [vmem:[#allocation2 + $0x490] sm:$0xff] 0.0
      %192 = vst [vmem:[#allocation2 + $0x498] sm:$0xff] 0.0
      %193 = vst [vmem:[#allocation2 + $0x4a0] sm:$0xff] 0.0
      %194 = vst [vmem:[#allocation2 + $0x4a8] sm:$0xff] 0.0
      %195 = vst [vmem:[#allocation2 + $0x4b0] sm:$0xff] 0.0
      %196 = vst [vmem:[#allocation2 + $0x4b8] sm:$0xff] 0.0
      %197 = vst [vmem:[#allocation2 + $0x4c0] sm:$0xff] 0.0
      %198 = vst [vmem:[#allocation2 + $0x4c8] sm:$0xff] 0.0
      %199 = vst [vmem:[#allocation2 + $0x4d0] sm:$0xff] 0.0
      %200 = vst [vmem:[#allocation2 + $0x4d8] sm:$0xff] 0.0
      %201 = vst [vmem:[#allocation2 + $0x4e0] sm:$0xff] 0.0
      %202 = vst [vmem:[#allocation2 + $0x4e8] sm:$0xff] 0.0
      %203 = vst [vmem:[#allocation2 + $0x4f0] sm:$0xff] 0.0
      %204 = vst [vmem:[#allocation2 + $0x4f8] sm:$0xff] 0.0
      %205 = vst [vmem:[#allocation2 + $0x500] sm:$0xff] 0.0
      %206 = vst [vmem:[#allocation2 + $0x508] sm:$0xff] 0.0
      %207 = vst [vmem:[#allocation2 + $0x510] sm:$0xff] 0.0
      %208 = vst [vmem:[#allocation2 + $0x518] sm:$0xff] 0.0
      %209 = vst [vmem:[#allocation2 + $0x520] sm:$0xff] 0.0
      %210 = vst [vmem:[#allocation2 + $0x528] sm:$0xff] 0.0
      %211 = vst [vmem:[#allocation2 + $0x530] sm:$0xff] 0.0
      %212 = vst [vmem:[#allocation2 + $0x538] sm:$0xff] 0.0
      %213 = vst [vmem:[#allocation2 + $0x540] sm:$0xff] 0.0
      %214 = vst [vmem:[#allocation2 + $0x548] sm:$0xff] 0.0
      %215 = vst [vmem:[#allocation2 + $0x550] sm:$0xff] 0.0
      %216 = vst [vmem:[#allocation2 + $0x558] sm:$0xff] 0.0
      %217 = vst [vmem:[#allocation2 + $0x560] sm:$0xff] 0.0
      %218 = vst [vmem:[#allocation2 + $0x568] sm:$0xff] 0.0
      %219 = vst [vmem:[#allocation2 + $0x570] sm:$0xff] 0.0
      %220 = vst [vmem:[#allocation2 + $0x578] sm:$0xff] 0.0
      %221 = vst [vmem:[#allocation2 + $0x580] sm:$0xff] 0.0
      %222 = vst [vmem:[#allocation2 + $0x588] sm:$0xff] 0.0
      %223 = vst [vmem:[#allocation2 + $0x590] sm:$0xff] 0.0
      %224 = vst [vmem:[#allocation2 + $0x598] sm:$0xff] 0.0
      %225 = vst [vmem:[#allocation2 + $0x5a0] sm:$0xff] 0.0
      %226 = vst [vmem:[#allocation2 + $0x5a8] sm:$0xff] 0.0
      %227 = vst [vmem:[#allocation2 + $0x5b0] sm:$0xff] 0.0
      %228 = vst [vmem:[#allocation2 + $0x5b8] sm:$0xff] 0.0
      %229 = vst [vmem:[#allocation2 + $0x5c0] sm:$0xff] 0.0
      %230 = vst [vmem:[#allocation2 + $0x5c8] sm:$0xff] 0.0
      %231 = vst [vmem:[#allocation2 + $0x5d0] sm:$0xff] 0.0
      %232 = vst [vmem:[#allocation2 + $0x5d8] sm:$0xff] 0.0
      %233 = vst [vmem:[#allocation2 + $0x5e0] sm:$0xff] 0.0
      %234 = vst [vmem:[#allocation2 + $0x5e8] sm:$0xff] 0.0
      %235 = vst [vmem:[#allocation2 + $0x5f0] sm:$0xff] 0.0
      %236 = vst [vmem:[#allocation2 + $0x5f8] sm:$0xff] 0.0
    $region21: #{tpu_custom_call.1} parent=1 // pred_fallthru
      _
    %v237 = vld [vmem:[#allocation2] sm:$0xff]
    %v238 = vld [vmem:[#allocation2 + $0x8] sm:$0xff]
    %v239 = vld [vmem:[#allocation2 + $0x10] sm:$0xff]
    %v240 = vld [vmem:[#allocation2 + $0x18] sm:$0xff]
    %v241 = vld [vmem:[#allocation2 + $0x20] sm:$0xff]
    %v242 = vld [vmem:[#allocation2 + $0x28] sm:$0xff]
    %v243 = vld [vmem:[#allocation2 + $0x30] sm:$0xff]
    %v244 = vld [vmem:[#allocation2 + $0x38] sm:$0xff]
    %v245 = vld [vmem:[#allocation2 + $0x40] sm:$0xff]
    %v246 = vld [vmem:[#allocation2 + $0x48] sm:$0xff]
    %v247 = vld [vmem:[#allocation2 + $0x50] sm:$0xff]
    %v248 = vld [vmem:[#allocation2 + $0x58] sm:$0xff]
    %v249 = vld [vmem:[#allocation2 + $0x60] sm:$0xff]
    %v250 = vld [vmem:[#allocation2 + $0x68] sm:$0xff]
    %v251 = vld [vmem:[#allocation2 + $0x70] sm:$0xff]
    %v252 = vld [vmem:[#allocation2 + $0x78] sm:$0xff]
    %v253 = vld [vmem:[#allocation2 + $0x80] sm:$0xff]
    %v254 = vld [vmem:[#allocation2 + $0x88] sm:$0xff]
    %v255 = vld [vmem:[#allocation2 + $0x90] sm:$0xff]
    %v256 = vld [vmem:[#allocation2 + $0x98] sm:$0xff]
    %v257 = vld [vmem:[#allocation2 + $0xa0] sm:$0xff]
    %v258 = vld [vmem:[#allocation2 + $0xa8] sm:$0xff]
    %v259 = vld [vmem:[#allocation2 + $0xb0] sm:$0xff]
    %v260 = vld [vmem:[#allocation2 + $0xb8] sm:$0xff]
    %v261 = vld [vmem:[#allocation2 + $0xc0] sm:$0xff]
    %v262 = vld [vmem:[#allocation2 + $0xc8] sm:$0xff]
    %v263 = vld [vmem:[#allocation2 + $0xd0] sm:$0xff]
    %v264 = vld [vmem:[#allocation2 + $0xd8] sm:$0xff]
    %v265 = vld [vmem:[#allocation2 + $0xe0] sm:$0xff]
    %v266 = vld [vmem:[#allocation2 + $0xe8] sm:$0xff]
    %v267 = vld [vmem:[#allocation2 + $0xf0] sm:$0xff]
    %v268 = vld [vmem:[#allocation2 + $0xf8] sm:$0xff]
    %v269 = vld [vmem:[#allocation2 + $0x100] sm:$0xff]
    %v270 = vld [vmem:[#allocation2 + $0x108] sm:$0xff]
    %v271 = vld [vmem:[#allocation2 + $0x110] sm:$0xff]
    %v272 = vld [vmem:[#allocation2 + $0x118] sm:$0xff]
    %v273 = vld [vmem:[#allocation2 + $0x120] sm:$0xff]
    %v274 = vld [vmem:[#allocation2 + $0x128] sm:$0xff]
    %v275 = vld [vmem:[#allocation2 + $0x130] sm:$0xff]
    %v276 = vld [vmem:[#allocation2 + $0x138] sm:$0xff]
    %v277 = vld [vmem:[#allocation2 + $0x140] sm:$0xff]
    %v278 = vld [vmem:[#allocation2 + $0x148] sm:$0xff]
    %v279 = vld [vmem:[#allocation2 + $0x150] sm:$0xff]
    %v280 = vld [vmem:[#allocation2 + $0x158] sm:$0xff]
    %v281 = vld [vmem:[#allocation2 + $0x160] sm:$0xff]
    %v282 = vld [vmem:[#allocation2 + $0x168] sm:$0xff]
    %v283 = vld [vmem:[#allocation2 + $0x170] sm:$0xff]
    %v284 = vld [vmem:[#allocation2 + $0x178] sm:$0xff]
    %v285 = vld [vmem:[#allocation2 + $0x180] sm:$0xff]
    %v286 = vld [vmem:[#allocation2 + $0x188] sm:$0xff]
    %v287 = vld [vmem:[#allocation2 + $0x190] sm:$0xff]
    %v288 = vld [vmem:[#allocation2 + $0x198] sm:$0xff]
    %v289 = vld [vmem:[#allocation2 + $0x1a0] sm:$0xff]
    %v290 = vld [vmem:[#allocation2 + $0x1a8] sm:$0xff]
    %v291 = vld [vmem:[#allocation2 + $0x1b0] sm:$0xff]
    %v292 = vld [vmem:[#allocation2 + $0x1b8] sm:$0xff]
    %v293 = vld [vmem:[#allocation2 + $0x1c0] sm:$0xff]
    %v294 = vld [vmem:[#allocation2 + $0x1c8] sm:$0xff]
    %v295 = vld [vmem:[#allocation2 + $0x1d0] sm:$0xff]
    %v296 = vld [vmem:[#allocation2 + $0x1d8] sm:$0xff]
    %v297 = vld [vmem:[#allocation2 + $0x1e0] sm:$0xff]
    %v298 = vld [vmem:[#allocation2 + $0x1e8] sm:$0xff]
    %v299 = vld [vmem:[#allocation2 + $0x1f0] sm:$0xff]
    %v300 = vld [vmem:[#allocation2 + $0x1f8] sm:$0xff]
    %v301 = vld [vmem:[#allocation2 + $0x200] sm:$0xff]
    %v302 = vld [vmem:[#allocation2 + $0x208] sm:$0xff]
    %v303 = vld [vmem:[#allocation2 + $0x210] sm:$0xff]
    %v304 = vld [vmem:[#allocation2 + $0x218] sm:$0xff]
    %v305 = vld [vmem:[#allocation2 + $0x220] sm:$0xff]
    %v306 = vld [vmem:[#allocation2 + $0x228] sm:$0xff]
    %v307 = vld [vmem:[#allocation2 + $0x230] sm:$0xff]
    %v308 = vld [vmem:[#allocation2 + $0x238] sm:$0xff]
    %v309 = vld [vmem:[#allocation2 + $0x240] sm:$0xff]
    %v310 = vld [vmem:[#allocation2 + $0x248] sm:$0xff]
    %v311 = vld [vmem:[#allocation2 + $0x250] sm:$0xff]
    %v312 = vld [vmem:[#allocation2 + $0x258] sm:$0xff]
    %v313 = vld [vmem:[#allocation2 + $0x260] sm:$0xff]
    %v314 = vld [vmem:[#allocation2 + $0x268] sm:$0xff]
    %v315 = vld [vmem:[#allocation2 + $0x270] sm:$0xff]
    %v316 = vld [vmem:[#allocation2 + $0x278] sm:$0xff]
    %v317 = vld [vmem:[#allocation2 + $0x280] sm:$0xff]
    %v318 = vld [vmem:[#allocation2 + $0x288] sm:$0xff]
    %v319 = vld [vmem:[#allocation2 + $0x290] sm:$0xff]
    %v320 = vld [vmem:[#allocation2 + $0x298] sm:$0xff]
    %v321 = vld [vmem:[#allocation2 + $0x2a0] sm:$0xff]
    %v322 = vld [vmem:[#allocation2 + $0x2a8] sm:$0xff]
    %v323 = vld [vmem:[#allocation2 + $0x2b0] sm:$0xff]
    %v324 = vld [vmem:[#allocation2 + $0x2b8] sm:$0xff]
    %v325 = vld [vmem:[#allocation2 + $0x2c0] sm:$0xff]
    %v326 = vld [vmem:[#allocation2 + $0x2c8] sm:$0xff]
    %v327 = vld [vmem:[#allocation2 + $0x2d0] sm:$0xff]
    %v328 = vld [vmem:[#allocation2 + $0x2d8] sm:$0xff]
    %v329 = vld [vmem:[#allocation2 + $0x2e0] sm:$0xff]
    %v330 = vld [vmem:[#allocation2 + $0x2e8] sm:$0xff]
    %v331 = vld [vmem:[#allocation2 + $0x2f0] sm:$0xff]
    %v332 = vld [vmem:[#allocation2 + $0x2f8] sm:$0xff]
    %v333 = vld [vmem:[#allocation2 + $0x300] sm:$0xff]
    %v334 = vld [vmem:[#allocation2 + $0x308] sm:$0xff]
    %v335 = vld [vmem:[#allocation2 + $0x310] sm:$0xff]
    %v336 = vld [vmem:[#allocation2 + $0x318] sm:$0xff]
    %v337 = vld [vmem:[#allocation2 + $0x320] sm:$0xff]
    %v338 = vld [vmem:[#allocation2 + $0x328] sm:$0xff]
    %v339 = vld [vmem:[#allocation2 + $0x330] sm:$0xff]
    %v340 = vld [vmem:[#allocation2 + $0x338] sm:$0xff]
    %v341 = vld [vmem:[#allocation2 + $0x340] sm:$0xff]
    %v342 = vld [vmem:[#allocation2 + $0x348] sm:$0xff]
    %v343 = vld [vmem:[#allocation2 + $0x350] sm:$0xff]
    %v344 = vld [vmem:[#allocation2 + $0x358] sm:$0xff]
    %v345 = vld [vmem:[#allocation2 + $0x360] sm:$0xff]
    %v346 = vld [vmem:[#allocation2 + $0x368] sm:$0xff]
    %v347 = vld [vmem:[#allocation2 + $0x370] sm:$0xff]
    %v348 = vld [vmem:[#allocation2 + $0x378] sm:$0xff]
    %v349 = vld [vmem:[#allocation2 + $0x380] sm:$0xff]
    %v350 = vld [vmem:[#allocation2 + $0x388] sm:$0xff]
    %v351 = vld [vmem:[#allocation2 + $0x390] sm:$0xff]
    %v352 = vld [vmem:[#allocation2 + $0x398] sm:$0xff]
    %v353 = vld [vmem:[#allocation2 + $0x3a0] sm:$0xff]
    %v354 = vld [vmem:[#allocation2 + $0x3a8] sm:$0xff]
    %v355 = vld [vmem:[#allocation2 + $0x3b0] sm:$0xff]
    %v356 = vld [vmem:[#allocation2 + $0x3b8] sm:$0xff]
    %v357 = vld [vmem:[#allocation2 + $0x3c0] sm:$0xff]
    %v358 = vld [vmem:[#allocation2 + $0x3c8] sm:$0xff]
    %v359 = vld [vmem:[#allocation2 + $0x3d0] sm:$0xff]
    %v360 = vld [vmem:[#allocation2 + $0x3d8] sm:$0xff]
    %v361 = vld [vmem:[#allocation2 + $0x3e0] sm:$0xff]
    %v362 = vld [vmem:[#allocation2 + $0x3e8] sm:$0xff]
    %v363 = vld [vmem:[#allocation2 + $0x3f0] sm:$0xff]
    %v364 = vld [vmem:[#allocation2 + $0x3f8] sm:$0xff]
    %v365 = vld [vmem:[#allocation2 + $0x400] sm:$0xff]
    %v366 = vld [vmem:[#allocation2 + $0x408] sm:$0xff]
    %v367 = vld [vmem:[#allocation2 + $0x410] sm:$0xff]
    %v368 = vld [vmem:[#allocation2 + $0x418] sm:$0xff]
    %v369 = vld [vmem:[#allocation2 + $0x420] sm:$0xff]
    %v370 = vld [vmem:[#allocation2 + $0x428] sm:$0xff]
    %v371 = vld [vmem:[#allocation2 + $0x430] sm:$0xff]
    %v372 = vld [vmem:[#allocation2 + $0x438] sm:$0xff]
    %v373 = vld [vmem:[#allocation2 + $0x440] sm:$0xff]
    %v374 = vld [vmem:[#allocation2 + $0x448] sm:$0xff]
    %v375 = vld [vmem:[#allocation2 + $0x450] sm:$0xff]
    %v376 = vld [vmem:[#allocation2 + $0x458] sm:$0xff]
    %v377 = vld [vmem:[#allocation2 + $0x460] sm:$0xff]
    %v378 = vld [vmem:[#allocation2 + $0x468] sm:$0xff]
    %v379 = vld [vmem:[#allocation2 + $0x470] sm:$0xff]
    %v380 = vld [vmem:[#allocation2 + $0x478] sm:$0xff]
    %v381 = vld [vmem:[#allocation2 + $0x480] sm:$0xff]
    %v382 = vld [vmem:[#allocation2 + $0x488] sm:$0xff]
    %v383 = vld [vmem:[#allocation2 + $0x490] sm:$0xff]
    %v384 = vld [vmem:[#allocation2 + $0x498] sm:$0xff]
    %v385 = vld [vmem:[#allocation2 + $0x4a0] sm:$0xff]
    %v386 = vld [vmem:[#allocation2 + $0x4a8] sm:$0xff]
    %v387 = vld [vmem:[#allocation2 + $0x4b0] sm:$0xff]
    %v388 = vld [vmem:[#allocation2 + $0x4b8] sm:$0xff]
    %v389 = vld [vmem:[#allocation2 + $0x4c0] sm:$0xff]
    %v390 = vld [vmem:[#allocation2 + $0x4c8] sm:$0xff]
    %v391 = vld [vmem:[#allocation2 + $0x4d0] sm:$0xff]
    %v392 = vld [vmem:[#allocation2 + $0x4d8] sm:$0xff]
    %v393 = vld [vmem:[#allocation2 + $0x4e0] sm:$0xff]
    %v394 = vld [vmem:[#allocation2 + $0x4e8] sm:$0xff]
    %v395 = vld [vmem:[#allocation2 + $0x4f0] sm:$0xff]
    %v396 = vld [vmem:[#allocation2 + $0x4f8] sm:$0xff]
    %v397 = vld [vmem:[#allocation2 + $0x500] sm:$0xff]
    %v398 = vld [vmem:[#allocation2 + $0x508] sm:$0xff]
    %v399 = vld [vmem:[#allocation2 + $0x510] sm:$0xff]
    %v400 = vld [vmem:[#allocation2 + $0x518] sm:$0xff]
    %v401 = vld [vmem:[#allocation2 + $0x520] sm:$0xff]
    %v402 = vld [vmem:[#allocation2 + $0x528] sm:$0xff]
    %v403 = vld [vmem:[#allocation2 + $0x530] sm:$0xff]
    %v404 = vld [vmem:[#allocation2 + $0x538] sm:$0xff]
    %v405 = vld [vmem:[#allocation2 + $0x540] sm:$0xff]
    %v406 = vld [vmem:[#allocation2 + $0x548] sm:$0xff]
    %v407 = vld [vmem:[#allocation2 + $0x550] sm:$0xff]
    %v408 = vld [vmem:[#allocation2 + $0x558] sm:$0xff]
    %v409 = vld [vmem:[#allocation2 + $0x560] sm:$0xff]
    %v410 = vld [vmem:[#allocation2 + $0x568] sm:$0xff]
    %v411 = vld [vmem:[#allocation2 + $0x570] sm:$0xff]
    %v412 = vld [vmem:[#allocation2 + $0x578] sm:$0xff]
    %v413 = vld [vmem:[#allocation2 + $0x580] sm:$0xff]
    %v414 = vld [vmem:[#allocation2 + $0x588] sm:$0xff]
    %v415 = vld [vmem:[#allocation2 + $0x590] sm:$0xff]
    %v416 = vld [vmem:[#allocation2 + $0x598] sm:$0xff]
    %v417 = vld [vmem:[#allocation2 + $0x5a0] sm:$0xff]
    %v418 = vld [vmem:[#allocation2 + $0x5a8] sm:$0xff]
    %v419 = vld [vmem:[#allocation2 + $0x5b0] sm:$0xff]
    %v420 = vld [vmem:[#allocation2 + $0x5b8] sm:$0xff]
    %v421 = vld [vmem:[#allocation2 + $0x5c0] sm:$0xff]
    %v422 = vld [vmem:[#allocation2 + $0x5c8] sm:$0xff]
    %v423 = vld [vmem:[#allocation2 + $0x5d0] sm:$0xff]
    %v424 = vld [vmem:[#allocation2 + $0x5d8] sm:$0xff]
    %v425 = vld [vmem:[#allocation2 + $0x5e0] sm:$0xff]
    %v426 = vld [vmem:[#allocation2 + $0x5e8] sm:$0xff]
    %v427 = vld [vmem:[#allocation2 + $0x5f0] sm:$0xff]
    %v428 = vld [vmem:[#allocation2 + $0x5f8] sm:$0xff]
    %v429 = vld [vmem:[#allocation3] sm:$0xf]
    %v430 = vld [vmem:[#allocation3 + $0x4] sm:$0xf]
    %v431 = vld [vmem:[#allocation3 + $0x8] sm:$0xf]
    %v432 = vld [vmem:[#allocation3 + $0xc] sm:$0xf]
    %v433 = vld [vmem:[#allocation3 + $0x10] sm:$0xf]
    %v434 = vld [vmem:[#allocation3 + $0x14] sm:$0xf]
    %v435 = vld [vmem:[#allocation3 + $0x18] sm:$0xf]
    %v436 = vld [vmem:[#allocation3 + $0x1c] sm:$0xf]
    %v437 = vld [vmem:[#allocation3 + $0x20] sm:$0xf]
    %v438 = vld [vmem:[#allocation3 + $0x24] sm:$0xf]
    %v439 = vld [vmem:[#allocation3 + $0x28] sm:$0xf]
    %v440 = vld [vmem:[#allocation3 + $0x2c] sm:$0xf]
    %v441 = vld [vmem:[#allocation3 + $0x30] sm:$0xf]
    %v442 = vld [vmem:[#allocation3 + $0x34] sm:$0xf]
    %v443 = vld [vmem:[#allocation3 + $0x38] sm:$0xf]
    %v444 = vld [vmem:[#allocation3 + $0x3c] sm:$0xf]
    %v445 = vld [vmem:[#allocation3 + $0x40] sm:$0xf]
    %v446 = vld [vmem:[#allocation3 + $0x44] sm:$0xf]
    %v447 = vld [vmem:[#allocation3 + $0x48] sm:$0xf]
    %v448 = vld [vmem:[#allocation3 + $0x4c] sm:$0xf]
    %v449 = vld [vmem:[#allocation3 + $0x50] sm:$0xf]
    %v450 = vld [vmem:[#allocation3 + $0x54] sm:$0xf]
    %v451 = vld [vmem:[#allocation3 + $0x58] sm:$0xf]
    %v452 = vld [vmem:[#allocation3 + $0x5c] sm:$0xf]
    %v453 = vld [vmem:[#allocation3 + $0x60] sm:$0xf]
    %v454 = vld [vmem:[#allocation3 + $0x64] sm:$0xf]
    %v455 = vld [vmem:[#allocation3 + $0x68] sm:$0xf]
    %v456 = vld [vmem:[#allocation3 + $0x6c] sm:$0xf]
    %v457 = vld [vmem:[#allocation3 + $0x70] sm:$0xf]
    %v458 = vld [vmem:[#allocation3 + $0x74] sm:$0xf]
    %v459 = vld [vmem:[#allocation3 + $0x78] sm:$0xf]
    %v460 = vld [vmem:[#allocation3 + $0x7c] sm:$0xf]
    %v461 = vld [vmem:[#allocation3 + $0x80] sm:$0xf]
    %v462 = vld [vmem:[#allocation3 + $0x84] sm:$0xf]
    %v463 = vld [vmem:[#allocation3 + $0x88] sm:$0xf]
    %v464 = vld [vmem:[#allocation3 + $0x8c] sm:$0xf]
    %v465 = vld [vmem:[#allocation3 + $0x90] sm:$0xf]
    %v466 = vld [vmem:[#allocation3 + $0x94] sm:$0xf]
    %v467 = vld [vmem:[#allocation3 + $0x98] sm:$0xf]
    %v468 = vld [vmem:[#allocation3 + $0x9c] sm:$0xf]
    %v469 = vld [vmem:[#allocation3 + $0xa0] sm:$0xf]
    %v470 = vld [vmem:[#allocation3 + $0xa4] sm:$0xf]
    %v471 = vld [vmem:[#allocation3 + $0xa8] sm:$0xf]
    %v472 = vld [vmem:[#allocation3 + $0xac] sm:$0xf]
    %v473 = vld [vmem:[#allocation3 + $0xb0] sm:$0xf]
    %v474 = vld [vmem:[#allocation3 + $0xb4] sm:$0xf]
    %v475 = vld [vmem:[#allocation3 + $0xb8] sm:$0xf]
    %v476 = vld [vmem:[#allocation3 + $0xbc] sm:$0xf]
    %v477 = vld [vmem:[#allocation3 + $0xc0] sm:$0xf]
    %v478 = vld [vmem:[#allocation3 + $0xc4] sm:$0xf]
    %v479 = vld [vmem:[#allocation3 + $0xc8] sm:$0xf]
    %v480 = vld [vmem:[#allocation3 + $0xcc] sm:$0xf]
    %v481 = vld [vmem:[#allocation3 + $0xd0] sm:$0xf]
    %v482 = vld [vmem:[#allocation3 + $0xd4] sm:$0xf]
    %v483 = vld [vmem:[#allocation3 + $0xd8] sm:$0xf]
    %v484 = vld [vmem:[#allocation3 + $0xdc] sm:$0xf]
    %v485 = vld [vmem:[#allocation3 + $0xe0] sm:$0xf]
    %v486 = vld [vmem:[#allocation3 + $0xe4] sm:$0xf]
    %v487 = vld [vmem:[#allocation3 + $0xe8] sm:$0xf]
    %v488 = vld [vmem:[#allocation3 + $0xec] sm:$0xf]
    %v489 = vld [vmem:[#allocation3 + $0xf0] sm:$0xf]
    %v490 = vld [vmem:[#allocation3 + $0xf4] sm:$0xf]
    %v491 = vld [vmem:[#allocation3 + $0xf8] sm:$0xf]
    %v492 = vld [vmem:[#allocation3 + $0xfc] sm:$0xf]
    %v493 = vld [vmem:[#allocation6] sm:$0xff]
    %v494 = vld [vmem:[#allocation6 + $0x8] sm:$0xf]
    %v495 = vld [vmem:[#allocation6 + $0xc] sm:$0xff]
    %v496 = vld [vmem:[#allocation6 + $0x14] sm:$0xf]
    %v497 = vld [vmem:[#allocation6 + $0x18] sm:$0xff]
    %v498 = vld [vmem:[#allocation6 + $0x20] sm:$0xf]
    %v499 = vld [vmem:[#allocation6 + $0x24] sm:$0xff]
    %v500 = vld [vmem:[#allocation6 + $0x2c] sm:$0xf]
    %v501 = vld [vmem:[#allocation6 + $0x30] sm:$0xff]
    %v502 = vld [vmem:[#allocation6 + $0x38] sm:$0xf]
    %v503 = vld [vmem:[#allocation6 + $0x3c] sm:$0xff]
    %v504 = vld [vmem:[#allocation6 + $0x44] sm:$0xf]
    %v505 = vld [vmem:[#allocation6 + $0x48] sm:$0xff]
    %v506 = vld [vmem:[#allocation6 + $0x50] sm:$0xf]
    %v507 = vld [vmem:[#allocation6 + $0x54] sm:$0xff]
    %v508 = vld [vmem:[#allocation6 + $0x5c] sm:$0xf]
    %v509 = vld [vmem:[#allocation6 + $0x60] sm:$0xff]
    %v510 = vld [vmem:[#allocation6 + $0x68] sm:$0xf]
    %v511 = vld [vmem:[#allocation6 + $0x6c] sm:$0xff]
    %v512 = vld [vmem:[#allocation6 + $0x74] sm:$0xf]
    %v513 = vld [vmem:[#allocation6 + $0x78] sm:$0xff]
    %v514 = vld [vmem:[#allocation6 + $0x80] sm:$0xf]
    %v515 = vld [vmem:[#allocation6 + $0x84] sm:$0xff]
    %v516 = vld [vmem:[#allocation6 + $0x8c] sm:$0xf]
    %v517 = vld [vmem:[#allocation6 + $0x90] sm:$0xff]
    %v518 = vld [vmem:[#allocation6 + $0x98] sm:$0xf]
    %v519 = vld [vmem:[#allocation6 + $0x9c] sm:$0xff]
    %v520 = vld [vmem:[#allocation6 + $0xa4] sm:$0xf]
    %v521 = vld [vmem:[#allocation6 + $0xa8] sm:$0xff]
    %v522 = vld [vmem:[#allocation6 + $0xb0] sm:$0xf]
    %v523 = vld [vmem:[#allocation6 + $0xb4] sm:$0xff]
    %v524 = vld [vmem:[#allocation6 + $0xbc] sm:$0xf]
    %v589 = vunpack.c.l.b16 %v429
    %v590 = vunpack.c.l.b16 %v430
    %v591 = vunpack.c.l.b16 %v431
    %v592 = vunpack.c.l.b16 %v432
    %v593 = vunpack.c.l.b16 %v433
    %v594 = vunpack.c.l.b16 %v434
    %v595 = vunpack.c.l.b16 %v435
    %v596 = vunpack.c.l.b16 %v436
    %v597 = vunpack.c.l.b16 %v437
    %v598 = vunpack.c.l.b16 %v438
    %v599 = vunpack.c.l.b16 %v439
    %v600 = vunpack.c.l.b16 %v440
    %v601 = vunpack.c.l.b16 %v441
    %v602 = vunpack.c.l.b16 %v442
    %v603 = vunpack.c.l.b16 %v443
    %v604 = vunpack.c.l.b16 %v444
    %v605 = vunpack.c.l.b16 %v445
    %v606 = vunpack.c.l.b16 %v446
    %v607 = vunpack.c.l.b16 %v447
    %v608 = vunpack.c.l.b16 %v448
    %v609 = vunpack.c.l.b16 %v449
    %v610 = vunpack.c.l.b16 %v450
    %v611 = vunpack.c.l.b16 %v451
    %v612 = vunpack.c.l.b16 %v452
    %v613 = vunpack.c.l.b16 %v453
    %v614 = vunpack.c.l.b16 %v454
    %v615 = vunpack.c.l.b16 %v455
    %v616 = vunpack.c.l.b16 %v456
    %v617 = vunpack.c.l.b16 %v457
    %v618 = vunpack.c.l.b16 %v458
    %v619 = vunpack.c.l.b16 %v459
    %v620 = vunpack.c.l.b16 %v460
    %v621 = vunpack.c.l.b16 %v461
    %v622 = vunpack.c.l.b16 %v462
    %v623 = vunpack.c.l.b16 %v463
    %v624 = vunpack.c.l.b16 %v464
    %v625 = vunpack.c.l.b16 %v465
    %v626 = vunpack.c.l.b16 %v466
    %v627 = vunpack.c.l.b16 %v467
    %v628 = vunpack.c.l.b16 %v468
    %v629 = vunpack.c.l.b16 %v469
    %v630 = vunpack.c.l.b16 %v470
    %v631 = vunpack.c.l.b16 %v471
    %v632 = vunpack.c.l.b16 %v472
    %v633 = vunpack.c.l.b16 %v473
    %v634 = vunpack.c.l.b16 %v474
    %v635 = vunpack.c.l.b16 %v475
    %v636 = vunpack.c.l.b16 %v476
    %v637 = vunpack.c.l.b16 %v477
    %v638 = vunpack.c.l.b16 %v478
    %v639 = vunpack.c.l.b16 %v479
    %v640 = vunpack.c.l.b16 %v480
    %v641 = vunpack.c.l.b16 %v481
    %v642 = vunpack.c.l.b16 %v482
    %v643 = vunpack.c.l.b16 %v483
    %v644 = vunpack.c.l.b16 %v484
    %v645 = vunpack.c.l.b16 %v485
    %v646 = vunpack.c.l.b16 %v486
    %v647 = vunpack.c.l.b16 %v487
    %v648 = vunpack.c.l.b16 %v488
    %v649 = vunpack.c.l.b16 %v489
    %v650 = vunpack.c.l.b16 %v490
    %v651 = vunpack.c.l.b16 %v491
    %v652 = vunpack.c.l.b16 %v492
    %v653 = vpack.c.b16 %v590, %v589
    %v654 = vpack.c.b16 %v592, %v591
    %v655 = vpack.c.b16 %v594, %v593
    %v656 = vpack.c.b16 %v596, %v595
    %v657 = vpack.c.b16 %v598, %v597
    %v658 = vpack.c.b16 %v600, %v599
    %v659 = vpack.c.b16 %v602, %v601
    %v660 = vpack.c.b16 %v604, %v603
    %v661 = vpack.c.b16 %v606, %v605
    %v662 = vpack.c.b16 %v608, %v607
    %v663 = vpack.c.b16 %v610, %v609
    %v664 = vpack.c.b16 %v612, %v611
    %v665 = vpack.c.b16 %v614, %v613
    %v666 = vpack.c.b16 %v616, %v615
    %v667 = vpack.c.b16 %v618, %v617
    %v668 = vpack.c.b16 %v620, %v619
    %v669 = vpack.c.b16 %v622, %v621
    %v670 = vpack.c.b16 %v624, %v623
    %v671 = vpack.c.b16 %v626, %v625
    %v672 = vpack.c.b16 %v628, %v627
    %v673 = vpack.c.b16 %v630, %v629
    %v674 = vpack.c.b16 %v632, %v631
    %v675 = vpack.c.b16 %v634, %v633
    %v676 = vpack.c.b16 %v636, %v635
    %v677 = vpack.c.b16 %v638, %v637
    %v678 = vpack.c.b16 %v640, %v639
    %v679 = vpack.c.b16 %v642, %v641
    %v680 = vpack.c.b16 %v644, %v643
    %v681 = vpack.c.b16 %v646, %v645
    %v682 = vpack.c.b16 %v648, %v647
    %v683 = vpack.c.b16 %v650, %v649
    %v684 = vpack.c.b16 %v652, %v651
    %v749 = vunpack.c.l.b16 %v493
    %v750 = vunpack.c.h.b16 %v493
    %v751 = vunpack.c.l.b16 %v494
    %v752 = vunpack.c.l.b16 %v495
    %v753 = vunpack.c.h.b16 %v495
    %v754 = vunpack.c.l.b16 %v496
    %v755 = vunpack.c.l.b16 %v497
    %v756 = vunpack.c.h.b16 %v497
    %v757 = vunpack.c.l.b16 %v498
    %v758 = vunpack.c.l.b16 %v499
    %v759 = vunpack.c.h.b16 %v499
    %v760 = vunpack.c.l.b16 %v500
    %v761 = vunpack.c.l.b16 %v501
    %v762 = vunpack.c.h.b16 %v501
    %v763 = vunpack.c.l.b16 %v502
    %v764 = vunpack.c.l.b16 %v503
    %v765 = vunpack.c.h.b16 %v503
    %v766 = vunpack.c.l.b16 %v504
    %v767 = vunpack.c.l.b16 %v505
    %v768 = vunpack.c.h.b16 %v505
    %v769 = vunpack.c.l.b16 %v506
    %v770 = vunpack.c.l.b16 %v507
    %v771 = vunpack.c.h.b16 %v507
    %v772 = vunpack.c.l.b16 %v508
    %v773 = vunpack.c.l.b16 %v509
    %v774 = vunpack.c.h.b16 %v509
    %v775 = vunpack.c.l.b16 %v510
    %v776 = vunpack.c.l.b16 %v511
    %v777 = vunpack.c.h.b16 %v511
    %v778 = vunpack.c.l.b16 %v512
    %v779 = vunpack.c.l.b16 %v513
    %v780 = vunpack.c.h.b16 %v513
    %v781 = vunpack.c.l.b16 %v514
    %v782 = vunpack.c.l.b16 %v515
    %v783 = vunpack.c.h.b16 %v515
    %v784 = vunpack.c.l.b16 %v516
    %v785 = vunpack.c.l.b16 %v517
    %v786 = vunpack.c.h.b16 %v517
    %v787 = vunpack.c.l.b16 %v518
    %v788 = vunpack.c.l.b16 %v519
    %v789 = vunpack.c.h.b16 %v519
    %v790 = vunpack.c.l.b16 %v520
    %v791 = vunpack.c.l.b16 %v521
    %v792 = vunpack.c.h.b16 %v521
    %v793 = vunpack.c.l.b16 %v522
    %v794 = vunpack.c.l.b16 %v523
    %v795 = vunpack.c.h.b16 %v523
    %v796 = vunpack.c.l.b16 %v524
    %v797 = vpack.c.b16 %v752, %v749
    %v798 = vpack.c.b16 %v753, %v750
    %v799 = vpack.c.b16 %v754, %v751
    %v800 = vpack.c.b16 %v758, %v755
    %v801 = vpack.c.b16 %v759, %v756
    %v802 = vpack.c.b16 %v760, %v757
    %v803 = vpack.c.b16 %v764, %v761
    %v804 = vpack.c.b16 %v765, %v762
    %v805 = vpack.c.b16 %v766, %v763
    %v806 = vpack.c.b16 %v770, %v767
    %v807 = vpack.c.b16 %v771, %v768
    %v808 = vpack.c.b16 %v772, %v769
    %v809 = vpack.c.b16 %v776, %v773
    %v810 = vpack.c.b16 %v777, %v774
    %v811 = vpack.c.b16 %v778, %v775
    %v812 = vpack.c.b16 %v782, %v779
    %v813 = vpack.c.b16 %v783, %v780
    %v814 = vpack.c.b16 %v784, %v781
    %v815 = vpack.c.b16 %v788, %v785
    %v816 = vpack.c.b16 %v789, %v786
    %v817 = vpack.c.b16 %v790, %v787
    %v818 = vpack.c.b16 %v794, %v791
    %v819 = vpack.c.b16 %v795, %v792
    %v820 = vpack.c.b16 %v796, %v793
    %845 = vmatprep.subr.bf16.mxu0 %v819
    %846 = vmatpush1.bf16.msra.mxu0 %v818
    %847 = vmatprep.subr.bf16.mxu0 %v816
    %848 = vmatpush1.bf16.msra.mxu0 %v815
    %849 = vmatprep.subr.bf16.mxu0 %v813
    %850 = vmatpush1.bf16.msra.mxu0 %v812
    %851 = vmatprep.subr.bf16.mxu0 %v810
    %852 = vmatpush1.bf16.msra.mxu0 %v809
    %853 = vmatprep.subr.bf16.mxu0 %v807
    %854 = vmatpush1.bf16.msra.mxu0 %v806
    %855 = vmatprep.subr.bf16.mxu0 %v804
    %856 = vmatpush1.bf16.msra.mxu0 %v803
    %857 = vmatprep.subr.bf16.mxu0 %v801
    %858 = vmatpush1.bf16.msra.mxu0 %v800
    %859 = vmatprep.subr.bf16.mxu0 %v798
    %860 = vmatpush1.bf16.msra.mxu0 %v797
    %861 = vmatprep.subr.bf16.mxu0 0
    %862 = vmatpush2.bf16.msra.mxu0 0
    %863 = vmatprep.subr.bf16.mxu0 0
    %864 = vmatpush2.bf16.msra.mxu0 0
    %865 = vmatprep.subr.bf16.mxu0 0
    %866 = vmatpush2.bf16.msra.mxu0 0
    %867 = vmatprep.subr.bf16.mxu0 0
    %868 = vmatpush2.bf16.msra.mxu0 0
    %869 = vmatprep.subr.bf16.mxu0 0
    %870 = vmatpush2.bf16.msra.mxu0 0
    %871 = vmatprep.subr.bf16.mxu0 0
    %872 = vmatpush2.bf16.msra.mxu0 0
    %873 = vmatprep.subr.bf16.mxu0 0
    %874 = vmatpush2.bf16.msra.mxu0 0
    %875 = vmatprep.subr.bf16.mxu0 0
    %876 = vmatpush2.bf16.msra.mxu0 0
    %877 = vmatprep.mubr.bf16.mxu0 0
    %878 = vmatmul.mubr.bf16.gmra.mxu0 %v653
    %v879 = vpop.f32.mrf.mxu0
    %v880 = vadd.f32 0.0, %v879
    %v881 = vpop.f32.mrf.mxu0
    %v882 = vadd.f32 0.0, %v881
    %v883 = vpop.f32.mrf.mxu0
    %v884 = vadd.f32 0.0, %v883
    %v885 = vpop.f32.mrf.mxu0
    %v886 = vadd.f32 0.0, %v885
    %887 = vmatprep.mubr.bf16.mxu0 0
    %888 = vmatmul.mubr.bf16.gmra.mxu0 %v654
    %v889 = vpop.f32.mrf.mxu0
    %v890 = vadd.f32 0.0, %v889
    %v891 = vpop.f32.mrf.mxu0
    %v892 = vadd.f32 0.0, %v891
    %v893 = vpop.f32.mrf.mxu0
    %v894 = vadd.f32 0.0, %v893
    %v895 = vpop.f32.mrf.mxu0
    %v896 = vadd.f32 0.0, %v895
    %897 = vmatprep.mubr.bf16.mxu0 0
    %898 = vmatmul.mubr.bf16.gmra.mxu0 %v655
    %v899 = vpop.f32.mrf.mxu0
    %v900 = vadd.f32 0.0, %v899
    %v901 = vpop.f32.mrf.mxu0
    %v902 = vadd.f32 0.0, %v901
    %v903 = vpop.f32.mrf.mxu0
    %v904 = vadd.f32 0.0, %v903
    %v905 = vpop.f32.mrf.mxu0
    %v906 = vadd.f32 0.0, %v905
    %907 = vmatprep.mubr.bf16.mxu0 0
    %908 = vmatmul.mubr.bf16.gmra.mxu0 %v656
    %v909 = vpop.f32.mrf.mxu0
    %v910 = vadd.f32 0.0, %v909
    %v911 = vpop.f32.mrf.mxu0
    %v912 = vadd.f32 0.0, %v911
    %v913 = vpop.f32.mrf.mxu0
    %v914 = vadd.f32 0.0, %v913
    %v915 = vpop.f32.mrf.mxu0
    %v916 = vadd.f32 0.0, %v915
    %917 = vmatprep.mubr.bf16.mxu0 0
    %918 = vmatmul.mubr.bf16.gmra.mxu0 %v657
    %v919 = vpop.f32.mrf.mxu0
    %v920 = vadd.f32 0.0, %v919
    %v921 = vpop.f32.mrf.mxu0
    %v922 = vadd.f32 0.0, %v921
    %v923 = vpop.f32.mrf.mxu0
    %v924 = vadd.f32 0.0, %v923
    %v925 = vpop.f32.mrf.mxu0
    %v926 = vadd.f32 0.0, %v925
    %927 = vmatprep.mubr.bf16.mxu0 0
    %928 = vmatmul.mubr.bf16.gmra.mxu0 %v658
    %v929 = vpop.f32.mrf.mxu0
    %v930 = vadd.f32 0.0, %v929
    %v931 = vpop.f32.mrf.mxu0
    %v932 = vadd.f32 0.0, %v931
    %v933 = vpop.f32.mrf.mxu0
    %v934 = vadd.f32 0.0, %v933
    %v935 = vpop.f32.mrf.mxu0
    %v936 = vadd.f32 0.0, %v935
    %937 = vmatprep.mubr.bf16.mxu0 0
    %938 = vmatmul.mubr.bf16.gmra.mxu0 %v659
    %v939 = vpop.f32.mrf.mxu0
    %v940 = vadd.f32 0.0, %v939
    %v941 = vpop.f32.mrf.mxu0
    %v942 = vadd.f32 0.0, %v941
    %v943 = vpop.f32.mrf.mxu0
    %v944 = vadd.f32 0.0, %v943
    %v945 = vpop.f32.mrf.mxu0
    %v946 = vadd.f32 0.0, %v945
    %947 = vmatprep.mubr.bf16.mxu0 0
    %948 = vmatmul.mubr.bf16.gmra.mxu0 %v660
    %v949 = vpop.f32.mrf.mxu0
    %v950 = vadd.f32 0.0, %v949
    %v951 = vpop.f32.mrf.mxu0
    %v952 = vadd.f32 0.0, %v951
    %v953 = vpop.f32.mrf.mxu0
    %v954 = vadd.f32 0.0, %v953
    %v955 = vpop.f32.mrf.mxu0
    %v956 = vadd.f32 0.0, %v955
    %957 = vmatprep.mubr.bf16.mxu0 0
    %958 = vmatmul.mubr.bf16.gmra.mxu0 %v661
    %v959 = vpop.f32.mrf.mxu0
    %v960 = vadd.f32 0.0, %v959
    %v961 = vpop.f32.mrf.mxu0
    %v962 = vadd.f32 0.0, %v961
    %v963 = vpop.f32.mrf.mxu0
    %v964 = vadd.f32 0.0, %v963
    %v965 = vpop.f32.mrf.mxu0
    %v966 = vadd.f32 0.0, %v965
    %967 = vmatprep.mubr.bf16.mxu0 0
    %968 = vmatmul.mubr.bf16.gmra.mxu0 %v662
    %v969 = vpop.f32.mrf.mxu0
    %v970 = vadd.f32 0.0, %v969
    %v971 = vpop.f32.mrf.mxu0
    %v972 = vadd.f32 0.0, %v971
    %v973 = vpop.f32.mrf.mxu0
    %v974 = vadd.f32 0.0, %v973
    %v975 = vpop.f32.mrf.mxu0
    %v976 = vadd.f32 0.0, %v975
    %977 = vmatprep.mubr.bf16.mxu0 0
    %978 = vmatmul.mubr.bf16.gmra.mxu0 %v663
    %v979 = vpop.f32.mrf.mxu0
    %v980 = vadd.f32 0.0, %v979
    %v981 = vpop.f32.mrf.mxu0
    %v982 = vadd.f32 0.0, %v981
    %v983 = vpop.f32.mrf.mxu0
    %v984 = vadd.f32 0.0, %v983
    %v985 = vpop.f32.mrf.mxu0
    %v986 = vadd.f32 0.0, %v985
    %987 = vmatprep.mubr.bf16.mxu0 0
    %988 = vmatmul.mubr.bf16.gmra.mxu0 %v664
    %v989 = vpop.f32.mrf.mxu0
    %v990 = vadd.f32 0.0, %v989
    %v991 = vpop.f32.mrf.mxu0
    %v992 = vadd.f32 0.0, %v991
    %v993 = vpop.f32.mrf.mxu0
    %v994 = vadd.f32 0.0, %v993
    %v995 = vpop.f32.mrf.mxu0
    %v996 = vadd.f32 0.0, %v995
    %997 = vmatprep.mubr.bf16.mxu0 0
    %998 = vmatmul.mubr.bf16.gmra.mxu0 %v665
    %v999 = vpop.f32.mrf.mxu0
    %v1000 = vadd.f32 0.0, %v999
    %v1001 = vpop.f32.mrf.mxu0
    %v1002 = vadd.f32 0.0, %v1001
    %v1003 = vpop.f32.mrf.mxu0
    %v1004 = vadd.f32 0.0, %v1003
    %v1005 = vpop.f32.mrf.mxu0
    %v1006 = vadd.f32 0.0, %v1005
    %1007 = vmatprep.mubr.bf16.mxu0 0
    %1008 = vmatmul.mubr.bf16.gmra.mxu0 %v666
    %v1009 = vpop.f32.mrf.mxu0
    %v1010 = vadd.f32 0.0, %v1009
    %v1011 = vpop.f32.mrf.mxu0
    %v1012 = vadd.f32 0.0, %v1011
    %v1013 = vpop.f32.mrf.mxu0
    %v1014 = vadd.f32 0.0, %v1013
    %v1015 = vpop.f32.mrf.mxu0
    %v1016 = vadd.f32 0.0, %v1015
    %1017 = vmatprep.mubr.bf16.mxu0 0
    %1018 = vmatmul.mubr.bf16.gmra.mxu0 %v667
    %v1019 = vpop.f32.mrf.mxu0
    %v1020 = vadd.f32 0.0, %v1019
    %v1021 = vpop.f32.mrf.mxu0
    %v1022 = vadd.f32 0.0, %v1021
    %v1023 = vpop.f32.mrf.mxu0
    %v1024 = vadd.f32 0.0, %v1023
    %v1025 = vpop.f32.mrf.mxu0
    %v1026 = vadd.f32 0.0, %v1025
    %1027 = vmatprep.mubr.bf16.mxu0 0
    %1028 = vmatmul.mubr.bf16.gmra.mxu0 %v668
    %v1029 = vpop.f32.mrf.mxu0
    %v1030 = vadd.f32 0.0, %v1029
    %v1031 = vpop.f32.mrf.mxu0
    %v1032 = vadd.f32 0.0, %v1031
    %v1033 = vpop.f32.mrf.mxu0
    %v1034 = vadd.f32 0.0, %v1033
    %v1035 = vpop.f32.mrf.mxu0
    %v1036 = vadd.f32 0.0, %v1035
    %1037 = vmatprep.mubr.bf16.mxu0 0
    %1038 = vmatmul.mubr.bf16.gmra.mxu0 %v669
    %v1039 = vpop.f32.mrf.mxu0
    %v1040 = vadd.f32 0.0, %v1039
    %v1041 = vpop.f32.mrf.mxu0
    %v1042 = vadd.f32 0.0, %v1041
    %v1043 = vpop.f32.mrf.mxu0
    %v1044 = vadd.f32 0.0, %v1043
    %v1045 = vpop.f32.mrf.mxu0
    %v1046 = vadd.f32 0.0, %v1045
    %1047 = vmatprep.mubr.bf16.mxu0 0
    %1048 = vmatmul.mubr.bf16.gmra.mxu0 %v670
    %v1049 = vpop.f32.mrf.mxu0
    %v1050 = vadd.f32 0.0, %v1049
    %v1051 = vpop.f32.mrf.mxu0
    %v1052 = vadd.f32 0.0, %v1051
    %v1053 = vpop.f32.mrf.mxu0
    %v1054 = vadd.f32 0.0, %v1053
    %v1055 = vpop.f32.mrf.mxu0
    %v1056 = vadd.f32 0.0, %v1055
    %1057 = vmatprep.mubr.bf16.mxu0 0
    %1058 = vmatmul.mubr.bf16.gmra.mxu0 %v671
    %v1059 = vpop.f32.mrf.mxu0
    %v1060 = vadd.f32 0.0, %v1059
    %v1061 = vpop.f32.mrf.mxu0
    %v1062 = vadd.f32 0.0, %v1061
    %v1063 = vpop.f32.mrf.mxu0
    %v1064 = vadd.f32 0.0, %v1063
    %v1065 = vpop.f32.mrf.mxu0
    %v1066 = vadd.f32 0.0, %v1065
    %1067 = vmatprep.mubr.bf16.mxu0 0
    %1068 = vmatmul.mubr.bf16.gmra.mxu0 %v672
    %v1069 = vpop.f32.mrf.mxu0
    %v1070 = vadd.f32 0.0, %v1069
    %v1071 = vpop.f32.mrf.mxu0
    %v1072 = vadd.f32 0.0, %v1071
    %v1073 = vpop.f32.mrf.mxu0
    %v1074 = vadd.f32 0.0, %v1073
    %v1075 = vpop.f32.mrf.mxu0
    %v1076 = vadd.f32 0.0, %v1075
    %1077 = vmatprep.mubr.bf16.mxu0 0
    %1078 = vmatmul.mubr.bf16.gmra.mxu0 %v673
    %v1079 = vpop.f32.mrf.mxu0
    %v1080 = vadd.f32 0.0, %v1079
    %v1081 = vpop.f32.mrf.mxu0
    %v1082 = vadd.f32 0.0, %v1081
    %v1083 = vpop.f32.mrf.mxu0
    %v1084 = vadd.f32 0.0, %v1083
    %v1085 = vpop.f32.mrf.mxu0
    %v1086 = vadd.f32 0.0, %v1085
    %1087 = vmatprep.mubr.bf16.mxu0 0
    %1088 = vmatmul.mubr.bf16.gmra.mxu0 %v674
    %v1089 = vpop.f32.mrf.mxu0
    %v1090 = vadd.f32 0.0, %v1089
    %v1091 = vpop.f32.mrf.mxu0
    %v1092 = vadd.f32 0.0, %v1091
    %v1093 = vpop.f32.mrf.mxu0
    %v1094 = vadd.f32 0.0, %v1093
    %v1095 = vpop.f32.mrf.mxu0
    %v1096 = vadd.f32 0.0, %v1095
    %1097 = vmatprep.mubr.bf16.mxu0 0
    %1098 = vmatmul.mubr.bf16.gmra.mxu0 %v675
    %v1099 = vpop.f32.mrf.mxu0
    %v1100 = vadd.f32 0.0, %v1099
    %v1101 = vpop.f32.mrf.mxu0
    %v1102 = vadd.f32 0.0, %v1101
    %v1103 = vpop.f32.mrf.mxu0
    %v1104 = vadd.f32 0.0, %v1103
    %v1105 = vpop.f32.mrf.mxu0
    %v1106 = vadd.f32 0.0, %v1105
    %1107 = vmatprep.mubr.bf16.mxu0 0
    %1108 = vmatmul.mubr.bf16.gmra.mxu0 %v676
    %v1109 = vpop.f32.mrf.mxu0
    %v1110 = vadd.f32 0.0, %v1109
    %v1111 = vpop.f32.mrf.mxu0
    %v1112 = vadd.f32 0.0, %v1111
    %v1113 = vpop.f32.mrf.mxu0
    %v1114 = vadd.f32 0.0, %v1113
    %v1115 = vpop.f32.mrf.mxu0
    %v1116 = vadd.f32 0.0, %v1115
    %1117 = vmatprep.mubr.bf16.mxu0 0
    %1118 = vmatmul.mubr.bf16.gmra.mxu0 %v677
    %v1119 = vpop.f32.mrf.mxu0
    %v1120 = vadd.f32 0.0, %v1119
    %v1121 = vpop.f32.mrf.mxu0
    %v1122 = vadd.f32 0.0, %v1121
    %v1123 = vpop.f32.mrf.mxu0
    %v1124 = vadd.f32 0.0, %v1123
    %v1125 = vpop.f32.mrf.mxu0
    %v1126 = vadd.f32 0.0, %v1125
    %1127 = vmatprep.mubr.bf16.mxu0 0
    %1128 = vmatmul.mubr.bf16.gmra.mxu0 %v678
    %v1129 = vpop.f32.mrf.mxu0
    %v1130 = vadd.f32 0.0, %v1129
    %v1131 = vpop.f32.mrf.mxu0
    %v1132 = vadd.f32 0.0, %v1131
    %v1133 = vpop.f32.mrf.mxu0
    %v1134 = vadd.f32 0.0, %v1133
    %v1135 = vpop.f32.mrf.mxu0
    %v1136 = vadd.f32 0.0, %v1135
    %1137 = vmatprep.mubr.bf16.mxu0 0
    %1138 = vmatmul.mubr.bf16.gmra.mxu0 %v679
    %v1139 = vpop.f32.mrf.mxu0
    %v1140 = vadd.f32 0.0, %v1139
    %v1141 = vpop.f32.mrf.mxu0
    %v1142 = vadd.f32 0.0, %v1141
    %v1143 = vpop.f32.mrf.mxu0
    %v1144 = vadd.f32 0.0, %v1143
    %v1145 = vpop.f32.mrf.mxu0
    %v1146 = vadd.f32 0.0, %v1145
    %1147 = vmatprep.mubr.bf16.mxu0 0
    %1148 = vmatmul.mubr.bf16.gmra.mxu0 %v680
    %v1149 = vpop.f32.mrf.mxu0
    %v1150 = vadd.f32 0.0, %v1149
    %v1151 = vpop.f32.mrf.mxu0
    %v1152 = vadd.f32 0.0, %v1151
    %v1153 = vpop.f32.mrf.mxu0
    %v1154 = vadd.f32 0.0, %v1153
    %v1155 = vpop.f32.mrf.mxu0
    %v1156 = vadd.f32 0.0, %v1155
    %1157 = vmatprep.mubr.bf16.mxu0 0
    %1158 = vmatmul.mubr.bf16.gmra.mxu0 %v681
    %v1159 = vpop.f32.mrf.mxu0
    %v1160 = vadd.f32 0.0, %v1159
    %v1161 = vpop.f32.mrf.mxu0
    %v1162 = vadd.f32 0.0, %v1161
    %v1163 = vpop.f32.mrf.mxu0
    %v1164 = vadd.f32 0.0, %v1163
    %v1165 = vpop.f32.mrf.mxu0
    %v1166 = vadd.f32 0.0, %v1165
    %1167 = vmatprep.mubr.bf16.mxu0 0
    %1168 = vmatmul.mubr.bf16.gmra.mxu0 %v682
    %v1169 = vpop.f32.mrf.mxu0
    %v1170 = vadd.f32 0.0, %v1169
    %v1171 = vpop.f32.mrf.mxu0
    %v1172 = vadd.f32 0.0, %v1171
    %v1173 = vpop.f32.mrf.mxu0
    %v1174 = vadd.f32 0.0, %v1173
    %v1175 = vpop.f32.mrf.mxu0
    %v1176 = vadd.f32 0.0, %v1175
    %1177 = vmatprep.mubr.bf16.mxu0 0
    %1178 = vmatmul.mubr.bf16.gmra.mxu0 %v683
    %v1179 = vpop.f32.mrf.mxu0
    %v1180 = vadd.f32 0.0, %v1179
    %v1181 = vpop.f32.mrf.mxu0
    %v1182 = vadd.f32 0.0, %v1181
    %v1183 = vpop.f32.mrf.mxu0
    %v1184 = vadd.f32 0.0, %v1183
    %v1185 = vpop.f32.mrf.mxu0
    %v1186 = vadd.f32 0.0, %v1185
    %1187 = vmatprep.mubr.bf16.mxu0 0
    %1188 = vmatmul.mubr.bf16.gmra.mxu0 %v684
    %v1189 = vpop.f32.mrf.mxu0
    %v1190 = vadd.f32 0.0, %v1189
    %v1191 = vpop.f32.mrf.mxu0
    %v1192 = vadd.f32 0.0, %v1191
    %v1193 = vpop.f32.mrf.mxu0
    %v1194 = vadd.f32 0.0, %v1193
    %v1195 = vpop.f32.mrf.mxu0
    %v1196 = vadd.f32 0.0, %v1195
    %1197 = vdwg.mxu0
    %1198 = vmatprep.subr.bf16.mxu0 0
    %1199 = vmatpush1.bf16.msra.mxu0 %v820
    %1200 = vmatprep.subr.bf16.mxu0 0
    %1201 = vmatpush1.bf16.msra.mxu0 %v817
    %1202 = vmatprep.subr.bf16.mxu0 0
    %1203 = vmatpush1.bf16.msra.mxu0 %v814
    %1204 = vmatprep.subr.bf16.mxu0 0
    %1205 = vmatpush1.bf16.msra.mxu0 %v811
    %1206 = vmatprep.subr.bf16.mxu0 0
    %1207 = vmatpush1.bf16.msra.mxu0 %v808
    %1208 = vmatprep.subr.bf16.mxu0 0
    %1209 = vmatpush1.bf16.msra.mxu0 %v805
    %1210 = vmatprep.subr.bf16.mxu0 0
    %1211 = vmatpush1.bf16.msra.mxu0 %v802
    %1212 = vmatprep.subr.bf16.mxu0 0
    %1213 = vmatpush1.bf16.msra.mxu0 %v799
    %1214 = vmatprep.subr.bf16.mxu0 0
    %1215 = vmatpush2.bf16.msra.mxu0 0
    %1216 = vmatprep.subr.bf16.mxu0 0
    %1217 = vmatpush2.bf16.msra.mxu0 0
    %1218 = vmatprep.subr.bf16.mxu0 0
    %1219 = vmatpush2.bf16.msra.mxu0 0
    %1220 = vmatprep.subr.bf16.mxu0 0
    %1221 = vmatpush2.bf16.msra.mxu0 0
    %1222 = vmatprep.subr.bf16.mxu0 0
    %1223 = vmatpush2.bf16.msra.mxu0 0
    %1224 = vmatprep.subr.bf16.mxu0 0
    %1225 = vmatpush2.bf16.msra.mxu0 0
    %1226 = vmatprep.subr.bf16.mxu0 0
    %1227 = vmatpush2.bf16.msra.mxu0 0
    %1228 = vmatprep.subr.bf16.mxu0 0
    %1229 = vmatpush2.bf16.msra.mxu0 0
    %1230 = vmatprep.mubr.bf16.mxu0 0
    %1231 = vmatmul.mubr.bf16.gmra.mxu0 %v653
    %v1232 = vpop.f32.mrf.mxu0
    %v1233 = vadd.f32 0.0, %v1232
    %v1234 = vpop.f32.mrf.mxu0
    %v1235 = vpop.f32.mrf.mxu0
    %v1236 = vadd.f32 0.0, %v1235
    %v1237 = vpop.f32.mrf.mxu0
    %1238 = vmatprep.mubr.bf16.mxu0 0
    %1239 = vmatmul.mubr.bf16.gmra.mxu0 %v654
    %v1240 = vpop.f32.mrf.mxu0
    %v1241 = vadd.f32 0.0, %v1240
    %v1242 = vpop.f32.mrf.mxu0
    %v1243 = vpop.f32.mrf.mxu0
    %v1244 = vadd.f32 0.0, %v1243
    %v1245 = vpop.f32.mrf.mxu0
    %1246 = vmatprep.mubr.bf16.mxu0 0
    %1247 = vmatmul.mubr.bf16.gmra.mxu0 %v655
    %v1248 = vpop.f32.mrf.mxu0
    %v1249 = vadd.f32 0.0, %v1248
    %v1250 = vpop.f32.mrf.mxu0
    %v1251 = vpop.f32.mrf.mxu0
    %v1252 = vadd.f32 0.0, %v1251
    %v1253 = vpop.f32.mrf.mxu0
    %1254 = vmatprep.mubr.bf16.mxu0 0
    %1255 = vmatmul.mubr.bf16.gmra.mxu0 %v656
    %v1256 = vpop.f32.mrf.mxu0
    %v1257 = vadd.f32 0.0, %v1256
    %v1258 = vpop.f32.mrf.mxu0
    %v1259 = vpop.f32.mrf.mxu0
    %v1260 = vadd.f32 0.0, %v1259
    %v1261 = vpop.f32.mrf.mxu0
    %1262 = vmatprep.mubr.bf16.mxu0 0
    %1263 = vmatmul.mubr.bf16.gmra.mxu0 %v657
    %v1264 = vpop.f32.mrf.mxu0
    %v1265 = vadd.f32 0.0, %v1264
    %v1266 = vpop.f32.mrf.mxu0
    %v1267 = vpop.f32.mrf.mxu0
    %v1268 = vadd.f32 0.0, %v1267
    %v1269 = vpop.f32.mrf.mxu0
    %1270 = vmatprep.mubr.bf16.mxu0 0
    %1271 = vmatmul.mubr.bf16.gmra.mxu0 %v658
    %v1272 = vpop.f32.mrf.mxu0
    %v1273 = vadd.f32 0.0, %v1272
    %v1274 = vpop.f32.mrf.mxu0
    %v1275 = vpop.f32.mrf.mxu0
    %v1276 = vadd.f32 0.0, %v1275
    %v1277 = vpop.f32.mrf.mxu0
    %1278 = vmatprep.mubr.bf16.mxu0 0
    %1279 = vmatmul.mubr.bf16.gmra.mxu0 %v659
    %v1280 = vpop.f32.mrf.mxu0
    %v1281 = vadd.f32 0.0, %v1280
    %v1282 = vpop.f32.mrf.mxu0
    %v1283 = vpop.f32.mrf.mxu0
    %v1284 = vadd.f32 0.0, %v1283
    %v1285 = vpop.f32.mrf.mxu0
    %1286 = vmatprep.mubr.bf16.mxu0 0
    %1287 = vmatmul.mubr.bf16.gmra.mxu0 %v660
    %v1288 = vpop.f32.mrf.mxu0
    %v1289 = vadd.f32 0.0, %v1288
    %v1290 = vpop.f32.mrf.mxu0
    %v1291 = vpop.f32.mrf.mxu0
    %v1292 = vadd.f32 0.0, %v1291
    %v1293 = vpop.f32.mrf.mxu0
    %1294 = vmatprep.mubr.bf16.mxu0 0
    %1295 = vmatmul.mubr.bf16.gmra.mxu0 %v661
    %v1296 = vpop.f32.mrf.mxu0
    %v1297 = vadd.f32 0.0, %v1296
    %v1298 = vpop.f32.mrf.mxu0
    %v1299 = vpop.f32.mrf.mxu0
    %v1300 = vadd.f32 0.0, %v1299
    %v1301 = vpop.f32.mrf.mxu0
    %1302 = vmatprep.mubr.bf16.mxu0 0
    %1303 = vmatmul.mubr.bf16.gmra.mxu0 %v662
    %v1304 = vpop.f32.mrf.mxu0
    %v1305 = vadd.f32 0.0, %v1304
    %v1306 = vpop.f32.mrf.mxu0
    %v1307 = vpop.f32.mrf.mxu0
    %v1308 = vadd.f32 0.0, %v1307
    %v1309 = vpop.f32.mrf.mxu0
    %1310 = vmatprep.mubr.bf16.mxu0 0
    %1311 = vmatmul.mubr.bf16.gmra.mxu0 %v663
    %v1312 = vpop.f32.mrf.mxu0
    %v1313 = vadd.f32 0.0, %v1312
    %v1314 = vpop.f32.mrf.mxu0
    %v1315 = vpop.f32.mrf.mxu0
    %v1316 = vadd.f32 0.0, %v1315
    %v1317 = vpop.f32.mrf.mxu0
    %1318 = vmatprep.mubr.bf16.mxu0 0
    %1319 = vmatmul.mubr.bf16.gmra.mxu0 %v664
    %v1320 = vpop.f32.mrf.mxu0
    %v1321 = vadd.f32 0.0, %v1320
    %v1322 = vpop.f32.mrf.mxu0
    %v1323 = vpop.f32.mrf.mxu0
    %v1324 = vadd.f32 0.0, %v1323
    %v1325 = vpop.f32.mrf.mxu0
    %1326 = vmatprep.mubr.bf16.mxu0 0
    %1327 = vmatmul.mubr.bf16.gmra.mxu0 %v665
    %v1328 = vpop.f32.mrf.mxu0
    %v1329 = vadd.f32 0.0, %v1328
    %v1330 = vpop.f32.mrf.mxu0
    %v1331 = vpop.f32.mrf.mxu0
    %v1332 = vadd.f32 0.0, %v1331
    %v1333 = vpop.f32.mrf.mxu0
    %1334 = vmatprep.mubr.bf16.mxu0 0
    %1335 = vmatmul.mubr.bf16.gmra.mxu0 %v666
    %v1336 = vpop.f32.mrf.mxu0
    %v1337 = vadd.f32 0.0, %v1336
    %v1338 = vpop.f32.mrf.mxu0
    %v1339 = vpop.f32.mrf.mxu0
    %v1340 = vadd.f32 0.0, %v1339
    %v1341 = vpop.f32.mrf.mxu0
    %1342 = vmatprep.mubr.bf16.mxu0 0
    %1343 = vmatmul.mubr.bf16.gmra.mxu0 %v667
    %v1344 = vpop.f32.mrf.mxu0
    %v1345 = vadd.f32 0.0, %v1344
    %v1346 = vpop.f32.mrf.mxu0
    %v1347 = vpop.f32.mrf.mxu0
    %v1348 = vadd.f32 0.0, %v1347
    %v1349 = vpop.f32.mrf.mxu0
    %1350 = vmatprep.mubr.bf16.mxu0 0
    %1351 = vmatmul.mubr.bf16.gmra.mxu0 %v668
    %v1352 = vpop.f32.mrf.mxu0
    %v1353 = vadd.f32 0.0, %v1352
    %v1354 = vpop.f32.mrf.mxu0
    %v1355 = vpop.f32.mrf.mxu0
    %v1356 = vadd.f32 0.0, %v1355
    %v1357 = vpop.f32.mrf.mxu0
    %1358 = vmatprep.mubr.bf16.mxu0 0
    %1359 = vmatmul.mubr.bf16.gmra.mxu0 %v669
    %v1360 = vpop.f32.mrf.mxu0
    %v1361 = vadd.f32 0.0, %v1360
    %v1362 = vpop.f32.mrf.mxu0
    %v1363 = vpop.f32.mrf.mxu0
    %v1364 = vadd.f32 0.0, %v1363
    %v1365 = vpop.f32.mrf.mxu0
    %1366 = vmatprep.mubr.bf16.mxu0 0
    %1367 = vmatmul.mubr.bf16.gmra.mxu0 %v670
    %v1368 = vpop.f32.mrf.mxu0
    %v1369 = vadd.f32 0.0, %v1368
    %v1370 = vpop.f32.mrf.mxu0
    %v1371 = vpop.f32.mrf.mxu0
    %v1372 = vadd.f32 0.0, %v1371
    %v1373 = vpop.f32.mrf.mxu0
    %1374 = vmatprep.mubr.bf16.mxu0 0
    %1375 = vmatmul.mubr.bf16.gmra.mxu0 %v671
    %v1376 = vpop.f32.mrf.mxu0
    %v1377 = vadd.f32 0.0, %v1376
    %v1378 = vpop.f32.mrf.mxu0
    %v1379 = vpop.f32.mrf.mxu0
    %v1380 = vadd.f32 0.0, %v1379
    %v1381 = vpop.f32.mrf.mxu0
    %1382 = vmatprep.mubr.bf16.mxu0 0
    %1383 = vmatmul.mubr.bf16.gmra.mxu0 %v672
    %v1384 = vpop.f32.mrf.mxu0
    %v1385 = vadd.f32 0.0, %v1384
    %v1386 = vpop.f32.mrf.mxu0
    %v1387 = vpop.f32.mrf.mxu0
    %v1388 = vadd.f32 0.0, %v1387
    %v1389 = vpop.f32.mrf.mxu0
    %1390 = vmatprep.mubr.bf16.mxu0 0
    %1391 = vmatmul.mubr.bf16.gmra.mxu0 %v673
    %v1392 = vpop.f32.mrf.mxu0
    %v1393 = vadd.f32 0.0, %v1392
    %v1394 = vpop.f32.mrf.mxu0
    %v1395 = vpop.f32.mrf.mxu0
    %v1396 = vadd.f32 0.0, %v1395
    %v1397 = vpop.f32.mrf.mxu0
    %1398 = vmatprep.mubr.bf16.mxu0 0
    %1399 = vmatmul.mubr.bf16.gmra.mxu0 %v674
    %v1400 = vpop.f32.mrf.mxu0
    %v1401 = vadd.f32 0.0, %v1400
    %v1402 = vpop.f32.mrf.mxu0
    %v1403 = vpop.f32.mrf.mxu0
    %v1404 = vadd.f32 0.0, %v1403
    %v1405 = vpop.f32.mrf.mxu0
    %1406 = vmatprep.mubr.bf16.mxu0 0
    %1407 = vmatmul.mubr.bf16.gmra.mxu0 %v675
    %v1408 = vpop.f32.mrf.mxu0
    %v1409 = vadd.f32 0.0, %v1408
    %v1410 = vpop.f32.mrf.mxu0
    %v1411 = vpop.f32.mrf.mxu0
    %v1412 = vadd.f32 0.0, %v1411
    %v1413 = vpop.f32.mrf.mxu0
    %1414 = vmatprep.mubr.bf16.mxu0 0
    %1415 = vmatmul.mubr.bf16.gmra.mxu0 %v676
    %v1416 = vpop.f32.mrf.mxu0
    %v1417 = vadd.f32 0.0, %v1416
    %v1418 = vpop.f32.mrf.mxu0
    %v1419 = vpop.f32.mrf.mxu0
    %v1420 = vadd.f32 0.0, %v1419
    %v1421 = vpop.f32.mrf.mxu0
    %1422 = vmatprep.mubr.bf16.mxu0 0
    %1423 = vmatmul.mubr.bf16.gmra.mxu0 %v677
    %v1424 = vpop.f32.mrf.mxu0
    %v1425 = vadd.f32 0.0, %v1424
    %v1426 = vpop.f32.mrf.mxu0
    %v1427 = vpop.f32.mrf.mxu0
    %v1428 = vadd.f32 0.0, %v1427
    %v1429 = vpop.f32.mrf.mxu0
    %1430 = vmatprep.mubr.bf16.mxu0 0
    %1431 = vmatmul.mubr.bf16.gmra.mxu0 %v678
    %v1432 = vpop.f32.mrf.mxu0
    %v1433 = vadd.f32 0.0, %v1432
    %v1434 = vpop.f32.mrf.mxu0
    %v1435 = vpop.f32.mrf.mxu0
    %v1436 = vadd.f32 0.0, %v1435
    %v1437 = vpop.f32.mrf.mxu0
    %1438 = vmatprep.mubr.bf16.mxu0 0
    %1439 = vmatmul.mubr.bf16.gmra.mxu0 %v679
    %v1440 = vpop.f32.mrf.mxu0
    %v1441 = vadd.f32 0.0, %v1440
    %v1442 = vpop.f32.mrf.mxu0
    %v1443 = vpop.f32.mrf.mxu0
    %v1444 = vadd.f32 0.0, %v1443
    %v1445 = vpop.f32.mrf.mxu0
    %1446 = vmatprep.mubr.bf16.mxu0 0
    %1447 = vmatmul.mubr.bf16.gmra.mxu0 %v680
    %v1448 = vpop.f32.mrf.mxu0
    %v1449 = vadd.f32 0.0, %v1448
    %v1450 = vpop.f32.mrf.mxu0
    %v1451 = vpop.f32.mrf.mxu0
    %v1452 = vadd.f32 0.0, %v1451
    %v1453 = vpop.f32.mrf.mxu0
    %1454 = vmatprep.mubr.bf16.mxu0 0
    %1455 = vmatmul.mubr.bf16.gmra.mxu0 %v681
    %v1456 = vpop.f32.mrf.mxu0
    %v1457 = vadd.f32 0.0, %v1456
    %v1458 = vpop.f32.mrf.mxu0
    %v1459 = vpop.f32.mrf.mxu0
    %v1460 = vadd.f32 0.0, %v1459
    %v1461 = vpop.f32.mrf.mxu0
    %1462 = vmatprep.mubr.bf16.mxu0 0
    %1463 = vmatmul.mubr.bf16.gmra.mxu0 %v682
    %v1464 = vpop.f32.mrf.mxu0
    %v1465 = vadd.f32 0.0, %v1464
    %v1466 = vpop.f32.mrf.mxu0
    %v1467 = vpop.f32.mrf.mxu0
    %v1468 = vadd.f32 0.0, %v1467
    %v1469 = vpop.f32.mrf.mxu0
    %1470 = vmatprep.mubr.bf16.mxu0 0
    %1471 = vmatmul.mubr.bf16.gmra.mxu0 %v683
    %v1472 = vpop.f32.mrf.mxu0
    %v1473 = vadd.f32 0.0, %v1472
    %v1474 = vpop.f32.mrf.mxu0
    %v1475 = vpop.f32.mrf.mxu0
    %v1476 = vadd.f32 0.0, %v1475
    %v1477 = vpop.f32.mrf.mxu0
    %1478 = vmatprep.mubr.bf16.mxu0 0
    %1479 = vmatmul.mubr.bf16.gmra.mxu0 %v684
    %v1480 = vpop.f32.mrf.mxu0
    %v1481 = vadd.f32 0.0, %v1480
    %v1482 = vpop.f32.mrf.mxu0
    %v1483 = vpop.f32.mrf.mxu0
    %v1484 = vadd.f32 0.0, %v1483
    %v1485 = vpop.f32.mrf.mxu0
    %1486 = vdwg.mxu0
    %v1487 = vadd.f32 %v237, %v880
    %v1488 = vadd.f32 %v238, %v882
    %v1489 = vadd.f32 %v239, %v1233
    %v1490 = vadd.f32 %v240, %v884
    %v1491 = vadd.f32 %v241, %v886
    %v1492 = vadd.f32 %v242, %v1236
    %v1493 = vadd.f32 %v243, %v890
    %v1494 = vadd.f32 %v244, %v892
    %v1495 = vadd.f32 %v245, %v1241
    %v1496 = vadd.f32 %v246, %v894
    %v1497 = vadd.f32 %v247, %v896
    %v1498 = vadd.f32 %v248, %v1244
    %v1499 = vadd.f32 %v249, %v900
    %v1500 = vadd.f32 %v250, %v902
    %v1501 = vadd.f32 %v251, %v1249
    %v1502 = vadd.f32 %v252, %v904
    %v1503 = vadd.f32 %v253, %v906
    %v1504 = vadd.f32 %v254, %v1252
    %v1505 = vadd.f32 %v255, %v910
    %v1506 = vadd.f32 %v256, %v912
    %v1507 = vadd.f32 %v257, %v1257
    %v1508 = vadd.f32 %v258, %v914
    %v1509 = vadd.f32 %v259, %v916
    %v1510 = vadd.f32 %v260, %v1260
    %v1511 = vadd.f32 %v261, %v920
    %v1512 = vadd.f32 %v262, %v922
    %v1513 = vadd.f32 %v263, %v1265
    %v1514 = vadd.f32 %v264, %v924
    %v1515 = vadd.f32 %v265, %v926
    %v1516 = vadd.f32 %v266, %v1268
    %v1517 = vadd.f32 %v267, %v930
    %v1518 = vadd.f32 %v268, %v932
    %v1519 = vadd.f32 %v269, %v1273
    %v1520 = vadd.f32 %v270, %v934
    %v1521 = vadd.f32 %v271, %v936
    %v1522 = vadd.f32 %v272, %v1276
    %v1523 = vadd.f32 %v273, %v940
    %v1524 = vadd.f32 %v274, %v942
    %v1525 = vadd.f32 %v275, %v1281
    %v1526 = vadd.f32 %v276, %v944
    %v1527 = vadd.f32 %v277, %v946
    %v1528 = vadd.f32 %v278, %v1284
    %v1529 = vadd.f32 %v279, %v950
    %v1530 = vadd.f32 %v280, %v952
    %v1531 = vadd.f32 %v281, %v1289
    %v1532 = vadd.f32 %v282, %v954
    %v1533 = vadd.f32 %v283, %v956
    %v1534 = vadd.f32 %v284, %v1292
    %v1535 = vadd.f32 %v285, %v960
    %v1536 = vadd.f32 %v286, %v962
    %v1537 = vadd.f32 %v287, %v1297
    %v1538 = vadd.f32 %v288, %v964
    %v1539 = vadd.f32 %v289, %v966
    %v1540 = vadd.f32 %v290, %v1300
    %v1541 = vadd.f32 %v291, %v970
    %v1542 = vadd.f32 %v292, %v972
    %v1543 = vadd.f32 %v293, %v1305
    %v1544 = vadd.f32 %v294, %v974
    %v1545 = vadd.f32 %v295, %v976
    %v1546 = vadd.f32 %v296, %v1308
    %v1547 = vadd.f32 %v297, %v980
    %v1548 = vadd.f32 %v298, %v982
    %v1549 = vadd.f32 %v299, %v1313
    %v1550 = vadd.f32 %v300, %v984
    %v1551 = vadd.f32 %v301, %v986
    %v1552 = vadd.f32 %v302, %v1316
    %v1553 = vadd.f32 %v303, %v990
    %v1554 = vadd.f32 %v304, %v992
    %v1555 = vadd.f32 %v305, %v1321
    %v1556 = vadd.f32 %v306, %v994
    %v1557 = vadd.f32 %v307, %v996
    %v1558 = vadd.f32 %v308, %v1324
    %v1559 = vadd.f32 %v309, %v1000
    %v1560 = vadd.f32 %v310, %v1002
    %v1561 = vadd.f32 %v311, %v1329
    %v1562 = vadd.f32 %v312, %v1004
    %v1563 = vadd.f32 %v313, %v1006
    %v1564 = vadd.f32 %v314, %v1332
    %v1565 = vadd.f32 %v315, %v1010
    %v1566 = vadd.f32 %v316, %v1012
    %v1567 = vadd.f32 %v317, %v1337
    %v1568 = vadd.f32 %v318, %v1014
    %v1569 = vadd.f32 %v319, %v1016
    %v1570 = vadd.f32 %v320, %v1340
    %v1571 = vadd.f32 %v321, %v1020
    %v1572 = vadd.f32 %v322, %v1022
    %v1573 = vadd.f32 %v323, %v1345
    %v1574 = vadd.f32 %v324, %v1024
    %v1575 = vadd.f32 %v325, %v1026
    %v1576 = vadd.f32 %v326, %v1348
    %v1577 = vadd.f32 %v327, %v1030
    %v1578 = vadd.f32 %v328, %v1032
    %v1579 = vadd.f32 %v329, %v1353
    %v1580 = vadd.f32 %v330, %v1034
    %v1581 = vadd.f32 %v331, %v1036
    %v1582 = vadd.f32 %v332, %v1356
    %v1583 = vadd.f32 %v333, %v1040
    %v1584 = vadd.f32 %v334, %v1042
    %v1585 = vadd.f32 %v335, %v1361
    %v1586 = vadd.f32 %v336, %v1044
    %v1587 = vadd.f32 %v337, %v1046
    %v1588 = vadd.f32 %v338, %v1364
    %v1589 = vadd.f32 %v339, %v1050
    %v1590 = vadd.f32 %v340, %v1052
    %v1591 = vadd.f32 %v341, %v1369
    %v1592 = vadd.f32 %v342, %v1054
    %v1593 = vadd.f32 %v343, %v1056
    %v1594 = vadd.f32 %v344, %v1372
    %v1595 = vadd.f32 %v345, %v1060
    %v1596 = vadd.f32 %v346, %v1062
    %v1597 = vadd.f32 %v347, %v1377
    %v1598 = vadd.f32 %v348, %v1064
    %v1599 = vadd.f32 %v349, %v1066
    %v1600 = vadd.f32 %v350, %v1380
    %v1601 = vadd.f32 %v351, %v1070
    %v1602 = vadd.f32 %v352, %v1072
    %v1603 = vadd.f32 %v353, %v1385
    %v1604 = vadd.f32 %v354, %v1074
    %v1605 = vadd.f32 %v355, %v1076
    %v1606 = vadd.f32 %v356, %v1388
    %v1607 = vadd.f32 %v357, %v1080
    %v1608 = vadd.f32 %v358, %v1082
    %v1609 = vadd.f32 %v359, %v1393
    %v1610 = vadd.f32 %v360, %v1084
    %v1611 = vadd.f32 %v361, %v1086
    %v1612 = vadd.f32 %v362, %v1396
    %v1613 = vadd.f32 %v363, %v1090
    %v1614 = vadd.f32 %v364, %v1092
    %v1615 = vadd.f32 %v365, %v1401
    %v1616 = vadd.f32 %v366, %v1094
    %v1617 = vadd.f32 %v367, %v1096
    %v1618 = vadd.f32 %v368, %v1404
    %v1619 = vadd.f32 %v369, %v1100
    %v1620 = vadd.f32 %v370, %v1102
    %v1621 = vadd.f32 %v371, %v1409
    %v1622 = vadd.f32 %v372, %v1104
    %v1623 = vadd.f32 %v373, %v1106
    %v1624 = vadd.f32 %v374, %v1412
    %v1625 = vadd.f32 %v375, %v1110
    %v1626 = vadd.f32 %v376, %v1112
    %v1627 = vadd.f32 %v377, %v1417
    %v1628 = vadd.f32 %v378, %v1114
    %v1629 = vadd.f32 %v379, %v1116
    %v1630 = vadd.f32 %v380, %v1420
    %v1631 = vadd.f32 %v381, %v1120
    %v1632 = vadd.f32 %v382, %v1122
    %v1633 = vadd.f32 %v383, %v1425
    %v1634 = vadd.f32 %v384, %v1124
    %v1635 = vadd.f32 %v385, %v1126
    %v1636 = vadd.f32 %v386, %v1428
    %v1637 = vadd.f32 %v387, %v1130
    %v1638 = vadd.f32 %v388, %v1132
    %v1639 = vadd.f32 %v389, %v1433
    %v1640 = vadd.f32 %v390, %v1134
    %v1641 = vadd.f32 %v391, %v1136
    %v1642 = vadd.f32 %v392, %v1436
    %v1643 = vadd.f32 %v393, %v1140
    %v1644 = vadd.f32 %v394, %v1142
    %v1645 = vadd.f32 %v395, %v1441
    %v1646 = vadd.f32 %v396, %v1144
    %v1647 = vadd.f32 %v397, %v1146
    %v1648 = vadd.f32 %v398, %v1444
    %v1649 = vadd.f32 %v399, %v1150
    %v1650 = vadd.f32 %v400, %v1152
    %v1651 = vadd.f32 %v401, %v1449
    %v1652 = vadd.f32 %v402, %v1154
    %v1653 = vadd.f32 %v403, %v1156
    %v1654 = vadd.f32 %v404, %v1452
    %v1655 = vadd.f32 %v405, %v1160
    %v1656 = vadd.f32 %v406, %v1162
    %v1657 = vadd.f32 %v407, %v1457
    %v1658 = vadd.f32 %v408, %v1164
    %v1659 = vadd.f32 %v409, %v1166
    %v1660 = vadd.f32 %v410, %v1460
    %v1661 = vadd.f32 %v411, %v1170
    %v1662 = vadd.f32 %v412, %v1172
    %v1663 = vadd.f32 %v413, %v1465
    %v1664 = vadd.f32 %v414, %v1174
    %v1665 = vadd.f32 %v415, %v1176
    %v1666 = vadd.f32 %v416, %v1468
    %v1667 = vadd.f32 %v417, %v1180
    %v1668 = vadd.f32 %v418, %v1182
    %v1669 = vadd.f32 %v419, %v1473
    %v1670 = vadd.f32 %v420, %v1184
    %v1671 = vadd.f32 %v421, %v1186
    %v1672 = vadd.f32 %v422, %v1476
    %v1673 = vadd.f32 %v423, %v1190
    %v1674 = vadd.f32 %v424, %v1192
    %v1675 = vadd.f32 %v425, %v1481
    %v1676 = vadd.f32 %v426, %v1194
    %v1677 = vadd.f32 %v427, %v1196
    %v1678 = vadd.f32 %v428, %v1484
    %1679 = vst [vmem:[#allocation2] sm:$0xff] %v1487
    %1680 = vst [vmem:[#allocation2 + $0x8] sm:$0xff] %v1488
    %1681 = vst [vmem:[#allocation2 + $0x10] sm:$0xff] %v1489
    %1682 = vst [vmem:[#allocation2 + $0x18] sm:$0xff] %v1490
    %1683 = vst [vmem:[#allocation2 + $0x20] sm:$0xff] %v1491
    %1684 = vst [vmem:[#allocation2 + $0x28] sm:$0xff] %v1492
    %1685 = vst [vmem:[#allocation2 + $0x30] sm:$0xff] %v1493
    %1686 = vst [vmem:[#allocation2 + $0x38] sm:$0xff] %v1494
    %1687 = vst [vmem:[#allocation2 + $0x40] sm:$0xff] %v1495
    %1688 = vst [vmem:[#allocation2 + $0x48] sm:$0xff] %v1496
    %1689 = vst [vmem:[#allocation2 + $0x50] sm:$0xff] %v1497
    %1690 = vst [vmem:[#allocation2 + $0x58] sm:$0xff] %v1498
    %1691 = vst [vmem:[#allocation2 + $0x60] sm:$0xff] %v1499
    %1692 = vst [vmem:[#allocation2 + $0x68] sm:$0xff] %v1500
    %1693 = vst [vmem:[#allocation2 + $0x70] sm:$0xff] %v1501
    %1694 = vst [vmem:[#allocation2 + $0x78] sm:$0xff] %v1502
    %1695 = vst [vmem:[#allocation2 + $0x80] sm:$0xff] %v1503
    %1696 = vst [vmem:[#allocation2 + $0x88] sm:$0xff] %v1504
    %1697 = vst [vmem:[#allocation2 + $0x90] sm:$0xff] %v1505
    %1698 = vst [vmem:[#allocation2 + $0x98] sm:$0xff] %v1506
    %1699 = vst [vmem:[#allocation2 + $0xa0] sm:$0xff] %v1507
    %1700 = vst [vmem:[#allocation2 + $0xa8] sm:$0xff] %v1508
    %1701 = vst [vmem:[#allocation2 + $0xb0] sm:$0xff] %v1509
    %1702 = vst [vmem:[#allocation2 + $0xb8] sm:$0xff] %v1510
    %1703 = vst [vmem:[#allocation2 + $0xc0] sm:$0xff] %v1511
    %1704 = vst [vmem:[#allocation2 + $0xc8] sm:$0xff] %v1512
    %1705 = vst [vmem:[#allocation2 + $0xd0] sm:$0xff] %v1513
    %1706 = vst [vmem:[#allocation2 + $0xd8] sm:$0xff] %v1514
    %1707 = vst [vmem:[#allocation2 + $0xe0] sm:$0xff] %v1515
    %1708 = vst [vmem:[#allocation2 + $0xe8] sm:$0xff] %v1516
    %1709 = vst [vmem:[#allocation2 + $0xf0] sm:$0xff] %v1517
    %1710 = vst [vmem:[#allocation2 + $0xf8] sm:$0xff] %v1518
    %1711 = vst [vmem:[#allocation2 + $0x100] sm:$0xff] %v1519
    %1712 = vst [vmem:[#allocation2 + $0x108] sm:$0xff] %v1520
    %1713 = vst [vmem:[#allocation2 + $0x110] sm:$0xff] %v1521
    %1714 = vst [vmem:[#allocation2 + $0x118] sm:$0xff] %v1522
    %1715 = vst [vmem:[#allocation2 + $0x120] sm:$0xff] %v1523
    %1716 = vst [vmem:[#allocation2 + $0x128] sm:$0xff] %v1524
    %1717 = vst [vmem:[#allocation2 + $0x130] sm:$0xff] %v1525
    %1718 = vst [vmem:[#allocation2 + $0x138] sm:$0xff] %v1526
    %1719 = vst [vmem:[#allocation2 + $0x140] sm:$0xff] %v1527
    %1720 = vst [vmem:[#allocation2 + $0x148] sm:$0xff] %v1528
    %1721 = vst [vmem:[#allocation2 + $0x150] sm:$0xff] %v1529
    %1722 = vst [vmem:[#allocation2 + $0x158] sm:$0xff] %v1530
    %1723 = vst [vmem:[#allocation2 + $0x160] sm:$0xff] %v1531
    %1724 = vst [vmem:[#allocation2 + $0x168] sm:$0xff] %v1532
    %1725 = vst [vmem:[#allocation2 + $0x170] sm:$0xff] %v1533
    %1726 = vst [vmem:[#allocation2 + $0x178] sm:$0xff] %v1534
    %1727 = vst [vmem:[#allocation2 + $0x180] sm:$0xff] %v1535
    %1728 = vst [vmem:[#allocation2 + $0x188] sm:$0xff] %v1536
    %1729 = vst [vmem:[#allocation2 + $0x190] sm:$0xff] %v1537
    %1730 = vst [vmem:[#allocation2 + $0x198] sm:$0xff] %v1538
    %1731 = vst [vmem:[#allocation2 + $0x1a0] sm:$0xff] %v1539
    %1732 = vst [vmem:[#allocation2 + $0x1a8] sm:$0xff] %v1540
    %1733 = vst [vmem:[#allocation2 + $0x1b0] sm:$0xff] %v1541
    %1734 = vst [vmem:[#allocation2 + $0x1b8] sm:$0xff] %v1542
    %1735 = vst [vmem:[#allocation2 + $0x1c0] sm:$0xff] %v1543
    %1736 = vst [vmem:[#allocation2 + $0x1c8] sm:$0xff] %v1544
    %1737 = vst [vmem:[#allocation2 + $0x1d0] sm:$0xff] %v1545
    %1738 = vst [vmem:[#allocation2 + $0x1d8] sm:$0xff] %v1546
    %1739 = vst [vmem:[#allocation2 + $0x1e0] sm:$0xff] %v1547
    %1740 = vst [vmem:[#allocation2 + $0x1e8] sm:$0xff] %v1548
    %1741 = vst [vmem:[#allocation2 + $0x1f0] sm:$0xff] %v1549
    %1742 = vst [vmem:[#allocation2 + $0x1f8] sm:$0xff] %v1550
    %1743 = vst [vmem:[#allocation2 + $0x200] sm:$0xff] %v1551
    %1744 = vst [vmem:[#allocation2 + $0x208] sm:$0xff] %v1552
    %1745 = vst [vmem:[#allocation2 + $0x210] sm:$0xff] %v1553
    %1746 = vst [vmem:[#allocation2 + $0x218] sm:$0xff] %v1554
    %1747 = vst [vmem:[#allocation2 + $0x220] sm:$0xff] %v1555
    %1748 = vst [vmem:[#allocation2 + $0x228] sm:$0xff] %v1556
    %1749 = vst [vmem:[#allocation2 + $0x230] sm:$0xff] %v1557
    %1750 = vst [vmem:[#allocation2 + $0x238] sm:$0xff] %v1558
    %1751 = vst [vmem:[#allocation2 + $0x240] sm:$0xff] %v1559
    %1752 = vst [vmem:[#allocation2 + $0x248] sm:$0xff] %v1560
    %1753 = vst [vmem:[#allocation2 + $0x250] sm:$0xff] %v1561
    %1754 = vst [vmem:[#allocation2 + $0x258] sm:$0xff] %v1562
    %1755 = vst [vmem:[#allocation2 + $0x260] sm:$0xff] %v1563
    %1756 = vst [vmem:[#allocation2 + $0x268] sm:$0xff] %v1564
    %1757 = vst [vmem:[#allocation2 + $0x270] sm:$0xff] %v1565
    %1758 = vst [vmem:[#allocation2 + $0x278] sm:$0xff] %v1566
    %1759 = vst [vmem:[#allocation2 + $0x280] sm:$0xff] %v1567
    %1760 = vst [vmem:[#allocation2 + $0x288] sm:$0xff] %v1568
    %1761 = vst [vmem:[#allocation2 + $0x290] sm:$0xff] %v1569
    %1762 = vst [vmem:[#allocation2 + $0x298] sm:$0xff] %v1570
    %1763 = vst [vmem:[#allocation2 + $0x2a0] sm:$0xff] %v1571
    %1764 = vst [vmem:[#allocation2 + $0x2a8] sm:$0xff] %v1572
    %1765 = vst [vmem:[#allocation2 + $0x2b0] sm:$0xff] %v1573
    %1766 = vst [vmem:[#allocation2 + $0x2b8] sm:$0xff] %v1574
    %1767 = vst [vmem:[#allocation2 + $0x2c0] sm:$0xff] %v1575
    %1768 = vst [vmem:[#allocation2 + $0x2c8] sm:$0xff] %v1576
    %1769 = vst [vmem:[#allocation2 + $0x2d0] sm:$0xff] %v1577
    %1770 = vst [vmem:[#allocation2 + $0x2d8] sm:$0xff] %v1578
    %1771 = vst [vmem:[#allocation2 + $0x2e0] sm:$0xff] %v1579
    %1772 = vst [vmem:[#allocation2 + $0x2e8] sm:$0xff] %v1580
    %1773 = vst [vmem:[#allocation2 + $0x2f0] sm:$0xff] %v1581
    %1774 = vst [vmem:[#allocation2 + $0x2f8] sm:$0xff] %v1582
    %1775 = vst [vmem:[#allocation2 + $0x300] sm:$0xff] %v1583
    %1776 = vst [vmem:[#allocation2 + $0x308] sm:$0xff] %v1584
    %1777 = vst [vmem:[#allocation2 + $0x310] sm:$0xff] %v1585
    %1778 = vst [vmem:[#allocation2 + $0x318] sm:$0xff] %v1586
    %1779 = vst [vmem:[#allocation2 + $0x320] sm:$0xff] %v1587
    %1780 = vst [vmem:[#allocation2 + $0x328] sm:$0xff] %v1588
    %1781 = vst [vmem:[#allocation2 + $0x330] sm:$0xff] %v1589
    %1782 = vst [vmem:[#allocation2 + $0x338] sm:$0xff] %v1590
    %1783 = vst [vmem:[#allocation2 + $0x340] sm:$0xff] %v1591
    %1784 = vst [vmem:[#allocation2 + $0x348] sm:$0xff] %v1592
    %1785 = vst [vmem:[#allocation2 + $0x350] sm:$0xff] %v1593
    %1786 = vst [vmem:[#allocation2 + $0x358] sm:$0xff] %v1594
    %1787 = vst [vmem:[#allocation2 + $0x360] sm:$0xff] %v1595
    %1788 = vst [vmem:[#allocation2 + $0x368] sm:$0xff] %v1596
    %1789 = vst [vmem:[#allocation2 + $0x370] sm:$0xff] %v1597
    %1790 = vst [vmem:[#allocation2 + $0x378] sm:$0xff] %v1598
    %1791 = vst [vmem:[#allocation2 + $0x380] sm:$0xff] %v1599
    %1792 = vst [vmem:[#allocation2 + $0x388] sm:$0xff] %v1600
    %1793 = vst [vmem:[#allocation2 + $0x390] sm:$0xff] %v1601
    %1794 = vst [vmem:[#allocation2 + $0x398] sm:$0xff] %v1602
    %1795 = vst [vmem:[#allocation2 + $0x3a0] sm:$0xff] %v1603
    %1796 = vst [vmem:[#allocation2 + $0x3a8] sm:$0xff] %v1604
    %1797 = vst [vmem:[#allocation2 + $0x3b0] sm:$0xff] %v1605
    %1798 = vst [vmem:[#allocation2 + $0x3b8] sm:$0xff] %v1606
    %1799 = vst [vmem:[#allocation2 + $0x3c0] sm:$0xff] %v1607
    %1800 = vst [vmem:[#allocation2 + $0x3c8] sm:$0xff] %v1608
    %1801 = vst [vmem:[#allocation2 + $0x3d0] sm:$0xff] %v1609
    %1802 = vst [vmem:[#allocation2 + $0x3d8] sm:$0xff] %v1610
    %1803 = vst [vmem:[#allocation2 + $0x3e0] sm:$0xff] %v1611
    %1804 = vst [vmem:[#allocation2 + $0x3e8] sm:$0xff] %v1612
    %1805 = vst [vmem:[#allocation2 + $0x3f0] sm:$0xff] %v1613
    %1806 = vst [vmem:[#allocation2 + $0x3f8] sm:$0xff] %v1614
    %1807 = vst [vmem:[#allocation2 + $0x400] sm:$0xff] %v1615
    %1808 = vst [vmem:[#allocation2 + $0x408] sm:$0xff] %v1616
    %1809 = vst [vmem:[#allocation2 + $0x410] sm:$0xff] %v1617
    %1810 = vst [vmem:[#allocation2 + $0x418] sm:$0xff] %v1618
    %1811 = vst [vmem:[#allocation2 + $0x420] sm:$0xff] %v1619
    %1812 = vst [vmem:[#allocation2 + $0x428] sm:$0xff] %v1620
    %1813 = vst [vmem:[#allocation2 + $0x430] sm:$0xff] %v1621
    %1814 = vst [vmem:[#allocation2 + $0x438] sm:$0xff] %v1622
    %1815 = vst [vmem:[#allocation2 + $0x440] sm:$0xff] %v1623
    %1816 = vst [vmem:[#allocation2 + $0x448] sm:$0xff] %v1624
    %1817 = vst [vmem:[#allocation2 + $0x450] sm:$0xff] %v1625
    %1818 = vst [vmem:[#allocation2 + $0x458] sm:$0xff] %v1626
    %1819 = vst [vmem:[#allocation2 + $0x460] sm:$0xff] %v1627
    %1820 = vst [vmem:[#allocation2 + $0x468] sm:$0xff] %v1628
    %1821 = vst [vmem:[#allocation2 + $0x470] sm:$0xff] %v1629
    %1822 = vst [vmem:[#allocation2 + $0x478] sm:$0xff] %v1630
    %1823 = vst [vmem:[#allocation2 + $0x480] sm:$0xff] %v1631
    %1824 = vst [vmem:[#allocation2 + $0x488] sm:$0xff] %v1632
    %1825 = vst [vmem:[#allocation2 + $0x490] sm:$0xff] %v1633
    %1826 = vst [vmem:[#allocation2 + $0x498] sm:$0xff] %v1634
    %1827 = vst [vmem:[#allocation2 + $0x4a0] sm:$0xff] %v1635
    %1828 = vst [vmem:[#allocation2 + $0x4a8] sm:$0xff] %v1636
    %1829 = vst [vmem:[#allocation2 + $0x4b0] sm:$0xff] %v1637
    %1830 = vst [vmem:[#allocation2 + $0x4b8] sm:$0xff] %v1638
    %1831 = vst [vmem:[#allocation2 + $0x4c0] sm:$0xff] %v1639
    %1832 = vst [vmem:[#allocation2 + $0x4c8] sm:$0xff] %v1640
    %1833 = vst [vmem:[#allocation2 + $0x4d0] sm:$0xff] %v1641
    %1834 = vst [vmem:[#allocation2 + $0x4d8] sm:$0xff] %v1642
    %1835 = vst [vmem:[#allocation2 + $0x4e0] sm:$0xff] %v1643
    %1836 = vst [vmem:[#allocation2 + $0x4e8] sm:$0xff] %v1644
    %1837 = vst [vmem:[#allocation2 + $0x4f0] sm:$0xff] %v1645
    %1838 = vst [vmem:[#allocation2 + $0x4f8] sm:$0xff] %v1646
    %1839 = vst [vmem:[#allocation2 + $0x500] sm:$0xff] %v1647
    %1840 = vst [vmem:[#allocation2 + $0x508] sm:$0xff] %v1648
    %1841 = vst [vmem:[#allocation2 + $0x510] sm:$0xff] %v1649
    %1842 = vst [vmem:[#allocation2 + $0x518] sm:$0xff] %v1650
    %1843 = vst [vmem:[#allocation2 + $0x520] sm:$0xff] %v1651
    %1844 = vst [vmem:[#allocation2 + $0x528] sm:$0xff] %v1652
    %1845 = vst [vmem:[#allocation2 + $0x530] sm:$0xff] %v1653
    %1846 = vst [vmem:[#allocation2 + $0x538] sm:$0xff] %v1654
    %1847 = vst [vmem:[#allocation2 + $0x540] sm:$0xff] %v1655
    %1848 = vst [vmem:[#allocation2 + $0x548] sm:$0xff] %v1656
    %1849 = vst [vmem:[#allocation2 + $0x550] sm:$0xff] %v1657
    %1850 = vst [vmem:[#allocation2 + $0x558] sm:$0xff] %v1658
    %1851 = vst [vmem:[#allocation2 + $0x560] sm:$0xff] %v1659
    %1852 = vst [vmem:[#allocation2 + $0x568] sm:$0xff] %v1660
    %1853 = vst [vmem:[#allocation2 + $0x570] sm:$0xff] %v1661
    %1854 = vst [vmem:[#allocation2 + $0x578] sm:$0xff] %v1662
    %1855 = vst [vmem:[#allocation2 + $0x580] sm:$0xff] %v1663
    %1856 = vst [vmem:[#allocation2 + $0x588] sm:$0xff] %v1664
    %1857 = vst [vmem:[#allocation2 + $0x590] sm:$0xff] %v1665
    %1858 = vst [vmem:[#allocation2 + $0x598] sm:$0xff] %v1666
    %1859 = vst [vmem:[#allocation2 + $0x5a0] sm:$0xff] %v1667
    %1860 = vst [vmem:[#allocation2 + $0x5a8] sm:$0xff] %v1668
    %1861 = vst [vmem:[#allocation2 + $0x5b0] sm:$0xff] %v1669
    %1862 = vst [vmem:[#allocation2 + $0x5b8] sm:$0xff] %v1670
    %1863 = vst [vmem:[#allocation2 + $0x5c0] sm:$0xff] %v1671
    %1864 = vst [vmem:[#allocation2 + $0x5c8] sm:$0xff] %v1672
    %1865 = vst [vmem:[#allocation2 + $0x5d0] sm:$0xff] %v1673
    %1866 = vst [vmem:[#allocation2 + $0x5d8] sm:$0xff] %v1674
    %1867 = vst [vmem:[#allocation2 + $0x5e0] sm:$0xff] %v1675
    %1868 = vst [vmem:[#allocation2 + $0x5e8] sm:$0xff] %v1676
    %1869 = vst [vmem:[#allocation2 + $0x5f0] sm:$0xff] %v1677
    %1870 = vst [vmem:[#allocation2 + $0x5f8] sm:$0xff] %v1678
    // Predicated region
    $region22: #{tpu_custom_call.1} parent=1 // pred_check
      %p1871 = pneg %p41
    $region23: #{tpu_custom_call.1} parent=1 // pred_check_branch
      %1873 = sbr.rel (%p1871) target = $region25
    $region24: #{tpu_custom_call.1} parent=1 // pred_region
      %v1874 = vld [vmem:[#allocation2] sm:$0xff]
      %v1875 = vld [vmem:[#allocation2 + $0x8] sm:$0xff]
      %v1876 = vld [vmem:[#allocation2 + $0x10] sm:$0xff]
      %v1877 = vld [vmem:[#allocation2 + $0x18] sm:$0xff]
      %v1878 = vld [vmem:[#allocation2 + $0x20] sm:$0xff]
      %v1879 = vld [vmem:[#allocation2 + $0x28] sm:$0xff]
      %v1880 = vld [vmem:[#allocation2 + $0x30] sm:$0xff]
      %v1881 = vld [vmem:[#allocation2 + $0x38] sm:$0xff]
      %v1882 = vld [vmem:[#allocation2 + $0x40] sm:$0xff]
      %v1883 = vld [vmem:[#allocation2 + $0x48] sm:$0xff]
      %v1884 = vld [vmem:[#allocation2 + $0x50] sm:$0xff]
      %v1885 = vld [vmem:[#allocation2 + $0x58] sm:$0xff]
      %v1886 = vld [vmem:[#allocation2 + $0x60] sm:$0xff]
      %v1887 = vld [vmem:[#allocation2 + $0x68] sm:$0xff]
      %v1888 = vld [vmem:[#allocation2 + $0x70] sm:$0xff]
      %v1889 = vld [vmem:[#allocation2 + $0x78] sm:$0xff]
      %v1890 = vld [vmem:[#allocation2 + $0x80] sm:$0xff]
      %v1891 = vld [vmem:[#allocation2 + $0x88] sm:$0xff]
      %v1892 = vld [vmem:[#allocation2 + $0x90] sm:$0xff]
      %v1893 = vld [vmem:[#allocation2 + $0x98] sm:$0xff]
      %v1894 = vld [vmem:[#allocation2 + $0xa0] sm:$0xff]
      %v1895 = vld [vmem:[#allocation2 + $0xa8] sm:$0xff]
      %v1896 = vld [vmem:[#allocation2 + $0xb0] sm:$0xff]
      %v1897 = vld [vmem:[#allocation2 + $0xb8] sm:$0xff]
      %v1898 = vld [vmem:[#allocation2 + $0xc0] sm:$0xff]
      %v1899 = vld [vmem:[#allocation2 + $0xc8] sm:$0xff]
      %v1900 = vld [vmem:[#allocation2 + $0xd0] sm:$0xff]
      %v1901 = vld [vmem:[#allocation2 + $0xd8] sm:$0xff]
      %v1902 = vld [vmem:[#allocation2 + $0xe0] sm:$0xff]
      %v1903 = vld [vmem:[#allocation2 + $0xe8] sm:$0xff]
      %v1904 = vld [vmem:[#allocation2 + $0xf0] sm:$0xff]
      %v1905 = vld [vmem:[#allocation2 + $0xf8] sm:$0xff]
      %v1906 = vld [vmem:[#allocation2 + $0x100] sm:$0xff]
      %v1907 = vld [vmem:[#allocation2 + $0x108] sm:$0xff]
      %v1908 = vld [vmem:[#allocation2 + $0x110] sm:$0xff]
      %v1909 = vld [vmem:[#allocation2 + $0x118] sm:$0xff]
      %v1910 = vld [vmem:[#allocation2 + $0x120] sm:$0xff]
      %v1911 = vld [vmem:[#allocation2 + $0x128] sm:$0xff]
      %v1912 = vld [vmem:[#allocation2 + $0x130] sm:$0xff]
      %v1913 = vld [vmem:[#allocation2 + $0x138] sm:$0xff]
      %v1914 = vld [vmem:[#allocation2 + $0x140] sm:$0xff]
      %v1915 = vld [vmem:[#allocation2 + $0x148] sm:$0xff]
      %v1916 = vld [vmem:[#allocation2 + $0x150] sm:$0xff]
      %v1917 = vld [vmem:[#allocation2 + $0x158] sm:$0xff]
      %v1918 = vld [vmem:[#allocation2 + $0x160] sm:$0xff]
      %v1919 = vld [vmem:[#allocation2 + $0x168] sm:$0xff]
      %v1920 = vld [vmem:[#allocation2 + $0x170] sm:$0xff]
      %v1921 = vld [vmem:[#allocation2 + $0x178] sm:$0xff]
      %v1922 = vld [vmem:[#allocation2 + $0x180] sm:$0xff]
      %v1923 = vld [vmem:[#allocation2 + $0x188] sm:$0xff]
      %v1924 = vld [vmem:[#allocation2 + $0x190] sm:$0xff]
      %v1925 = vld [vmem:[#allocation2 + $0x198] sm:$0xff]
      %v1926 = vld [vmem:[#allocation2 + $0x1a0] sm:$0xff]
      %v1927 = vld [vmem:[#allocation2 + $0x1a8] sm:$0xff]
      %v1928 = vld [vmem:[#allocation2 + $0x1b0] sm:$0xff]
      %v1929 = vld [vmem:[#allocation2 + $0x1b8] sm:$0xff]
      %v1930 = vld [vmem:[#allocation2 + $0x1c0] sm:$0xff]
      %v1931 = vld [vmem:[#allocation2 + $0x1c8] sm:$0xff]
      %v1932 = vld [vmem:[#allocation2 + $0x1d0] sm:$0xff]
      %v1933 = vld [vmem:[#allocation2 + $0x1d8] sm:$0xff]
      %v1934 = vld [vmem:[#allocation2 + $0x1e0] sm:$0xff]
      %v1935 = vld [vmem:[#allocation2 + $0x1e8] sm:$0xff]
      %v1936 = vld [vmem:[#allocation2 + $0x1f0] sm:$0xff]
      %v1937 = vld [vmem:[#allocation2 + $0x1f8] sm:$0xff]
      %v1938 = vld [vmem:[#allocation2 + $0x200] sm:$0xff]
      %v1939 = vld [vmem:[#allocation2 + $0x208] sm:$0xff]
      %v1940 = vld [vmem:[#allocation2 + $0x210] sm:$0xff]
      %v1941 = vld [vmem:[#allocation2 + $0x218] sm:$0xff]
      %v1942 = vld [vmem:[#allocation2 + $0x220] sm:$0xff]
      %v1943 = vld [vmem:[#allocation2 + $0x228] sm:$0xff]
      %v1944 = vld [vmem:[#allocation2 + $0x230] sm:$0xff]
      %v1945 = vld [vmem:[#allocation2 + $0x238] sm:$0xff]
      %v1946 = vld [vmem:[#allocation2 + $0x240] sm:$0xff]
      %v1947 = vld [vmem:[#allocation2 + $0x248] sm:$0xff]
      %v1948 = vld [vmem:[#allocation2 + $0x250] sm:$0xff]
      %v1949 = vld [vmem:[#allocation2 + $0x258] sm:$0xff]
      %v1950 = vld [vmem:[#allocation2 + $0x260] sm:$0xff]
      %v1951 = vld [vmem:[#allocation2 + $0x268] sm:$0xff]
      %v1952 = vld [vmem:[#allocation2 + $0x270] sm:$0xff]
      %v1953 = vld [vmem:[#allocation2 + $0x278] sm:$0xff]
      %v1954 = vld [vmem:[#allocation2 + $0x280] sm:$0xff]
      %v1955 = vld [vmem:[#allocation2 + $0x288] sm:$0xff]
      %v1956 = vld [vmem:[#allocation2 + $0x290] sm:$0xff]
      %v1957 = vld [vmem:[#allocation2 + $0x298] sm:$0xff]
      %v1958 = vld [vmem:[#allocation2 + $0x2a0] sm:$0xff]
      %v1959 = vld [vmem:[#allocation2 + $0x2a8] sm:$0xff]
      %v1960 = vld [vmem:[#allocation2 + $0x2b0] sm:$0xff]
      %v1961 = vld [vmem:[#allocation2 + $0x2b8] sm:$0xff]
      %v1962 = vld [vmem:[#allocation2 + $0x2c0] sm:$0xff]
      %v1963 = vld [vmem:[#allocation2 + $0x2c8] sm:$0xff]
      %v1964 = vld [vmem:[#allocation2 + $0x2d0] sm:$0xff]
      %v1965 = vld [vmem:[#allocation2 + $0x2d8] sm:$0xff]
      %v1966 = vld [vmem:[#allocation2 + $0x2e0] sm:$0xff]
      %v1967 = vld [vmem:[#allocation2 + $0x2e8] sm:$0xff]
      %v1968 = vld [vmem:[#allocation2 + $0x2f0] sm:$0xff]
      %v1969 = vld [vmem:[#allocation2 + $0x2f8] sm:$0xff]
      %v1970 = vld [vmem:[#allocation2 + $0x300] sm:$0xff]
      %v1971 = vld [vmem:[#allocation2 + $0x308] sm:$0xff]
      %v1972 = vld [vmem:[#allocation2 + $0x310] sm:$0xff]
      %v1973 = vld [vmem:[#allocation2 + $0x318] sm:$0xff]
      %v1974 = vld [vmem:[#allocation2 + $0x320] sm:$0xff]
      %v1975 = vld [vmem:[#allocation2 + $0x328] sm:$0xff]
      %v1976 = vld [vmem:[#allocation2 + $0x330] sm:$0xff]
      %v1977 = vld [vmem:[#allocation2 + $0x338] sm:$0xff]
      %v1978 = vld [vmem:[#allocation2 + $0x340] sm:$0xff]
      %v1979 = vld [vmem:[#allocation2 + $0x348] sm:$0xff]
      %v1980 = vld [vmem:[#allocation2 + $0x350] sm:$0xff]
      %v1981 = vld [vmem:[#allocation2 + $0x358] sm:$0xff]
      %v1982 = vld [vmem:[#allocation2 + $0x360] sm:$0xff]
      %v1983 = vld [vmem:[#allocation2 + $0x368] sm:$0xff]
      %v1984 = vld [vmem:[#allocation2 + $0x370] sm:$0xff]
      %v1985 = vld [vmem:[#allocation2 + $0x378] sm:$0xff]
      %v1986 = vld [vmem:[#allocation2 + $0x380] sm:$0xff]
      %v1987 = vld [vmem:[#allocation2 + $0x388] sm:$0xff]
      %v1988 = vld [vmem:[#allocation2 + $0x390] sm:$0xff]
      %v1989 = vld [vmem:[#allocation2 + $0x398] sm:$0xff]
      %v1990 = vld [vmem:[#allocation2 + $0x3a0] sm:$0xff]
      %v1991 = vld [vmem:[#allocation2 + $0x3a8] sm:$0xff]
      %v1992 = vld [vmem:[#allocation2 + $0x3b0] sm:$0xff]
      %v1993 = vld [vmem:[#allocation2 + $0x3b8] sm:$0xff]
      %v1994 = vld [vmem:[#allocation2 + $0x3c0] sm:$0xff]
      %v1995 = vld [vmem:[#allocation2 + $0x3c8] sm:$0xff]
      %v1996 = vld [vmem:[#allocation2 + $0x3d0] sm:$0xff]
      %v1997 = vld [vmem:[#allocation2 + $0x3d8] sm:$0xff]
      %v1998 = vld [vmem:[#allocation2 + $0x3e0] sm:$0xff]
      %v1999 = vld [vmem:[#allocation2 + $0x3e8] sm:$0xff]
      %v2000 = vld [vmem:[#allocation2 + $0x3f0] sm:$0xff]
      %v2001 = vld [vmem:[#allocation2 + $0x3f8] sm:$0xff]
      %v2002 = vld [vmem:[#allocation2 + $0x400] sm:$0xff]
      %v2003 = vld [vmem:[#allocation2 + $0x408] sm:$0xff]
      %v2004 = vld [vmem:[#allocation2 + $0x410] sm:$0xff]
      %v2005 = vld [vmem:[#allocation2 + $0x418] sm:$0xff]
      %v2006 = vld [vmem:[#allocation2 + $0x420] sm:$0xff]
      %v2007 = vld [vmem:[#allocation2 + $0x428] sm:$0xff]
      %v2008 = vld [vmem:[#allocation2 + $0x430] sm:$0xff]
      %v2009 = vld [vmem:[#allocation2 + $0x438] sm:$0xff]
      %v2010 = vld [vmem:[#allocation2 + $0x440] sm:$0xff]
      %v2011 = vld [vmem:[#allocation2 + $0x448] sm:$0xff]
      %v2012 = vld [vmem:[#allocation2 + $0x450] sm:$0xff]
      %v2013 = vld [vmem:[#allocation2 + $0x458] sm:$0xff]
      %v2014 = vld [vmem:[#allocation2 + $0x460] sm:$0xff]
      %v2015 = vld [vmem:[#allocation2 + $0x468] sm:$0xff]
      %v2016 = vld [vmem:[#allocation2 + $0x470] sm:$0xff]
      %v2017 = vld [vmem:[#allocation2 + $0x478] sm:$0xff]
      %v2018 = vld [vmem:[#allocation2 + $0x480] sm:$0xff]
      %v2019 = vld [vmem:[#allocation2 + $0x488] sm:$0xff]
      %v2020 = vld [vmem:[#allocation2 + $0x490] sm:$0xff]
      %v2021 = vld [vmem:[#allocation2 + $0x498] sm:$0xff]
      %v2022 = vld [vmem:[#allocation2 + $0x4a0] sm:$0xff]
      %v2023 = vld [vmem:[#allocation2 + $0x4a8] sm:$0xff]
      %v2024 = vld [vmem:[#allocation2 + $0x4b0] sm:$0xff]
      %v2025 = vld [vmem:[#allocation2 + $0x4b8] sm:$0xff]
      %v2026 = vld [vmem:[#allocation2 + $0x4c0] sm:$0xff]
      %v2027 = vld [vmem:[#allocation2 + $0x4c8] sm:$0xff]
      %v2028 = vld [vmem:[#allocation2 + $0x4d0] sm:$0xff]
      %v2029 = vld [vmem:[#allocation2 + $0x4d8] sm:$0xff]
      %v2030 = vld [vmem:[#allocation2 + $0x4e0] sm:$0xff]
      %v2031 = vld [vmem:[#allocation2 + $0x4e8] sm:$0xff]
      %v2032 = vld [vmem:[#allocation2 + $0x4f0] sm:$0xff]
      %v2033 = vld [vmem:[#allocation2 + $0x4f8] sm:$0xff]
      %v2034 = vld [vmem:[#allocation2 + $0x500] sm:$0xff]
      %v2035 = vld [vmem:[#allocation2 + $0x508] sm:$0xff]
      %v2036 = vld [vmem:[#allocation2 + $0x510] sm:$0xff]
      %v2037 = vld [vmem:[#allocation2 + $0x518] sm:$0xff]
      %v2038 = vld [vmem:[#allocation2 + $0x520] sm:$0xff]
      %v2039 = vld [vmem:[#allocation2 + $0x528] sm:$0xff]
      %v2040 = vld [vmem:[#allocation2 + $0x530] sm:$0xff]
      %v2041 = vld [vmem:[#allocation2 + $0x538] sm:$0xff]
      %v2042 = vld [vmem:[#allocation2 + $0x540] sm:$0xff]
      %v2043 = vld [vmem:[#allocation2 + $0x548] sm:$0xff]
      %v2044 = vld [vmem:[#allocation2 + $0x550] sm:$0xff]
      %v2045 = vld [vmem:[#allocation2 + $0x558] sm:$0xff]
      %v2046 = vld [vmem:[#allocation2 + $0x560] sm:$0xff]
      %v2047 = vld [vmem:[#allocation2 + $0x568] sm:$0xff]
      %v2048 = vld [vmem:[#allocation2 + $0x570] sm:$0xff]
      %v2049 = vld [vmem:[#allocation2 + $0x578] sm:$0xff]
      %v2050 = vld [vmem:[#allocation2 + $0x580] sm:$0xff]
      %v2051 = vld [vmem:[#allocation2 + $0x588] sm:$0xff]
      %v2052 = vld [vmem:[#allocation2 + $0x590] sm:$0xff]
      %v2053 = vld [vmem:[#allocation2 + $0x598] sm:$0xff]
      %v2054 = vld [vmem:[#allocation2 + $0x5a0] sm:$0xff]
      %v2055 = vld [vmem:[#allocation2 + $0x5a8] sm:$0xff]
      %v2056 = vld [vmem:[#allocation2 + $0x5b0] sm:$0xff]
      %v2057 = vld [vmem:[#allocation2 + $0x5b8] sm:$0xff]
      %v2058 = vld [vmem:[#allocation2 + $0x5c0] sm:$0xff]
      %v2059 = vld [vmem:[#allocation2 + $0x5c8] sm:$0xff]
      %v2060 = vld [vmem:[#allocation2 + $0x5d0] sm:$0xff]
      %v2061 = vld [vmem:[#allocation2 + $0x5d8] sm:$0xff]
      %v2062 = vld [vmem:[#allocation2 + $0x5e0] sm:$0xff]
      %v2063 = vld [vmem:[#allocation2 + $0x5e8] sm:$0xff]
      %v2064 = vld [vmem:[#allocation2 + $0x5f0] sm:$0xff]
      %v2065 = vld [vmem:[#allocation2 + $0x5f8] sm:$0xff]
      %v2066 = vpack.c.bf16 %v1877, %v1874
      %v2067 = vpack.c.bf16 %v1878, %v1875
      %v2068 = vpack.c.bf16 %v1879, %v1876
      %v2069 = vpack.c.bf16 %v1883, %v1880
      %v2070 = vpack.c.bf16 %v1884, %v1881
      %v2071 = vpack.c.bf16 %v1885, %v1882
      %v2072 = vpack.c.bf16 %v1889, %v1886
      %v2073 = vpack.c.bf16 %v1890, %v1887
      %v2074 = vpack.c.bf16 %v1891, %v1888
      %v2075 = vpack.c.bf16 %v1895, %v1892
      %v2076 = vpack.c.bf16 %v1896, %v1893
      %v2077 = vpack.c.bf16 %v1897, %v1894
      %v2078 = vpack.c.bf16 %v1901, %v1898
      %v2079 = vpack.c.bf16 %v1902, %v1899
      %v2080 = vpack.c.bf16 %v1903, %v1900
      %v2081 = vpack.c.bf16 %v1907, %v1904
      %v2082 = vpack.c.bf16 %v1908, %v1905
      %v2083 = vpack.c.bf16 %v1909, %v1906
      %v2084 = vpack.c.bf16 %v1913, %v1910
      %v2085 = vpack.c.bf16 %v1914, %v1911
      %v2086 = vpack.c.bf16 %v1915, %v1912
      %v2087 = vpack.c.bf16 %v1919, %v1916
      %v2088 = vpack.c.bf16 %v1920, %v1917
      %v2089 = vpack.c.bf16 %v1921, %v1918
      %v2090 = vpack.c.bf16 %v1925, %v1922
      %v2091 = vpack.c.bf16 %v1926, %v1923
      %v2092 = vpack.c.bf16 %v1927, %v1924
      %v2093 = vpack.c.bf16 %v1931, %v1928
      %v2094 = vpack.c.bf16 %v1932, %v1929
      %v2095 = vpack.c.bf16 %v1933, %v1930
      %v2096 = vpack.c.bf16 %v1937, %v1934
      %v2097 = vpack.c.bf16 %v1938, %v1935
      %v2098 = vpack.c.bf16 %v1939, %v1936
      %v2099 = vpack.c.bf16 %v1943, %v1940
      %v2100 = vpack.c.bf16 %v1944, %v1941
      %v2101 = vpack.c.bf16 %v1945, %v1942
      %v2102 = vpack.c.bf16 %v1949, %v1946
      %v2103 = vpack.c.bf16 %v1950, %v1947
      %v2104 = vpack.c.bf16 %v1951, %v1948
      %v2105 = vpack.c.bf16 %v1955, %v1952
      %v2106 = vpack.c.bf16 %v1956, %v1953
      %v2107 = vpack.c.bf16 %v1957, %v1954
      %v2108 = vpack.c.bf16 %v1961, %v1958
      %v2109 = vpack.c.bf16 %v1962, %v1959
      %v2110 = vpack.c.bf16 %v1963, %v1960
      %v2111 = vpack.c.bf16 %v1967, %v1964
      %v2112 = vpack.c.bf16 %v1968, %v1965
      %v2113 = vpack.c.bf16 %v1969, %v1966
      %v2114 = vpack.c.bf16 %v1973, %v1970
      %v2115 = vpack.c.bf16 %v1974, %v1971
      %v2116 = vpack.c.bf16 %v1975, %v1972
      %v2117 = vpack.c.bf16 %v1979, %v1976
      %v2118 = vpack.c.bf16 %v1980, %v1977
      %v2119 = vpack.c.bf16 %v1981, %v1978
      %v2120 = vpack.c.bf16 %v1985, %v1982
      %v2121 = vpack.c.bf16 %v1986, %v1983
      %v2122 = vpack.c.bf16 %v1987, %v1984
      %v2123 = vpack.c.bf16 %v1991, %v1988
      %v2124 = vpack.c.bf16 %v1992, %v1989
      %v2125 = vpack.c.bf16 %v1993, %v1990
      %v2126 = vpack.c.bf16 %v1997, %v1994
      %v2127 = vpack.c.bf16 %v1998, %v1995
      %v2128 = vpack.c.bf16 %v1999, %v1996
      %v2129 = vpack.c.bf16 %v2003, %v2000
      %v2130 = vpack.c.bf16 %v2004, %v2001
      %v2131 = vpack.c.bf16 %v2005, %v2002
      %v2132 = vpack.c.bf16 %v2009, %v2006
      %v2133 = vpack.c.bf16 %v2010, %v2007
      %v2134 = vpack.c.bf16 %v2011, %v2008
      %v2135 = vpack.c.bf16 %v2015, %v2012
      %v2136 = vpack.c.bf16 %v2016, %v2013
      %v2137 = vpack.c.bf16 %v2017, %v2014
      %v2138 = vpack.c.bf16 %v2021, %v2018
      %v2139 = vpack.c.bf16 %v2022, %v2019
      %v2140 = vpack.c.bf16 %v2023, %v2020
      %v2141 = vpack.c.bf16 %v2027, %v2024
      %v2142 = vpack.c.bf16 %v2028, %v2025
      %v2143 = vpack.c.bf16 %v2029, %v2026
      %v2144 = vpack.c.bf16 %v2033, %v2030
      %v2145 = vpack.c.bf16 %v2034, %v2031
      %v2146 = vpack.c.bf16 %v2035, %v2032
      %v2147 = vpack.c.bf16 %v2039, %v2036
      %v2148 = vpack.c.bf16 %v2040, %v2037
      %v2149 = vpack.c.bf16 %v2041, %v2038
      %v2150 = vpack.c.bf16 %v2045, %v2042
      %v2151 = vpack.c.bf16 %v2046, %v2043
      %v2152 = vpack.c.bf16 %v2047, %v2044
      %v2153 = vpack.c.bf16 %v2051, %v2048
      %v2154 = vpack.c.bf16 %v2052, %v2049
      %v2155 = vpack.c.bf16 %v2053, %v2050
      %v2156 = vpack.c.bf16 %v2057, %v2054
      %v2157 = vpack.c.bf16 %v2058, %v2055
      %v2158 = vpack.c.bf16 %v2059, %v2056
      %v2159 = vpack.c.bf16 %v2063, %v2060
      %v2160 = vpack.c.bf16 %v2064, %v2061
      %v2161 = vpack.c.bf16 %v2065, %v2062
      %v2258 = vunpack.c.l.b16 %v2066
      %v2259 = vunpack.c.l.b16 %v2067
      %v2260 = vunpack.c.l.b16 %v2068
      %v2261 = vunpack.c.h.b16 %v2066
      %v2262 = vunpack.c.h.b16 %v2067
      %v2263 = vunpack.c.h.b16 %v2068
      %v2264 = vunpack.c.l.b16 %v2069
      %v2265 = vunpack.c.l.b16 %v2070
      %v2266 = vunpack.c.l.b16 %v2071
      %v2267 = vunpack.c.h.b16 %v2069
      %v2268 = vunpack.c.h.b16 %v2070
      %v2269 = vunpack.c.h.b16 %v2071
      %v2270 = vunpack.c.l.b16 %v2072
      %v2271 = vunpack.c.l.b16 %v2073
      %v2272 = vunpack.c.l.b16 %v2074
      %v2273 = vunpack.c.h.b16 %v2072
      %v2274 = vunpack.c.h.b16 %v2073
      %v2275 = vunpack.c.h.b16 %v2074
      %v2276 = vunpack.c.l.b16 %v2075
      %v2277 = vunpack.c.l.b16 %v2076
      %v2278 = vunpack.c.l.b16 %v2077
      %v2279 = vunpack.c.h.b16 %v2075
      %v2280 = vunpack.c.h.b16 %v2076
      %v2281 = vunpack.c.h.b16 %v2077
      %v2282 = vunpack.c.l.b16 %v2078
      %v2283 = vunpack.c.l.b16 %v2079
      %v2284 = vunpack.c.l.b16 %v2080
      %v2285 = vunpack.c.h.b16 %v2078
      %v2286 = vunpack.c.h.b16 %v2079
      %v2287 = vunpack.c.h.b16 %v2080
      %v2288 = vunpack.c.l.b16 %v2081
      %v2289 = vunpack.c.l.b16 %v2082
      %v2290 = vunpack.c.l.b16 %v2083
      %v2291 = vunpack.c.h.b16 %v2081
      %v2292 = vunpack.c.h.b16 %v2082
      %v2293 = vunpack.c.h.b16 %v2083
      %v2294 = vunpack.c.l.b16 %v2084
      %v2295 = vunpack.c.l.b16 %v2085
      %v2296 = vunpack.c.l.b16 %v2086
      %v2297 = vunpack.c.h.b16 %v2084
      %v2298 = vunpack.c.h.b16 %v2085
      %v2299 = vunpack.c.h.b16 %v2086
      %v2300 = vunpack.c.l.b16 %v2087
      %v2301 = vunpack.c.l.b16 %v2088
      %v2302 = vunpack.c.l.b16 %v2089
      %v2303 = vunpack.c.h.b16 %v2087
      %v2304 = vunpack.c.h.b16 %v2088
      %v2305 = vunpack.c.h.b16 %v2089
      %v2306 = vunpack.c.l.b16 %v2090
      %v2307 = vunpack.c.l.b16 %v2091
      %v2308 = vunpack.c.l.b16 %v2092
      %v2309 = vunpack.c.h.b16 %v2090
      %v2310 = vunpack.c.h.b16 %v2091
      %v2311 = vunpack.c.h.b16 %v2092
      %v2312 = vunpack.c.l.b16 %v2093
      %v2313 = vunpack.c.l.b16 %v2094
      %v2314 = vunpack.c.l.b16 %v2095
      %v2315 = vunpack.c.h.b16 %v2093
      %v2316 = vunpack.c.h.b16 %v2094
      %v2317 = vunpack.c.h.b16 %v2095
      %v2318 = vunpack.c.l.b16 %v2096
      %v2319 = vunpack.c.l.b16 %v2097
      %v2320 = vunpack.c.l.b16 %v2098
      %v2321 = vunpack.c.h.b16 %v2096
      %v2322 = vunpack.c.h.b16 %v2097
      %v2323 = vunpack.c.h.b16 %v2098
      %v2324 = vunpack.c.l.b16 %v2099
      %v2325 = vunpack.c.l.b16 %v2100
      %v2326 = vunpack.c.l.b16 %v2101
      %v2327 = vunpack.c.h.b16 %v2099
      %v2328 = vunpack.c.h.b16 %v2100
      %v2329 = vunpack.c.h.b16 %v2101
      %v2330 = vunpack.c.l.b16 %v2102
      %v2331 = vunpack.c.l.b16 %v2103
      %v2332 = vunpack.c.l.b16 %v2104
      %v2333 = vunpack.c.h.b16 %v2102
      %v2334 = vunpack.c.h.b16 %v2103
      %v2335 = vunpack.c.h.b16 %v2104
      %v2336 = vunpack.c.l.b16 %v2105
      %v2337 = vunpack.c.l.b16 %v2106
      %v2338 = vunpack.c.l.b16 %v2107
      %v2339 = vunpack.c.h.b16 %v2105
      %v2340 = vunpack.c.h.b16 %v2106
      %v2341 = vunpack.c.h.b16 %v2107
      %v2342 = vunpack.c.l.b16 %v2108
      %v2343 = vunpack.c.l.b16 %v2109
      %v2344 = vunpack.c.l.b16 %v2110
      %v2345 = vunpack.c.h.b16 %v2108
      %v2346 = vunpack.c.h.b16 %v2109
      %v2347 = vunpack.c.h.b16 %v2110
      %v2348 = vunpack.c.l.b16 %v2111
      %v2349 = vunpack.c.l.b16 %v2112
      %v2350 = vunpack.c.l.b16 %v2113
      %v2351 = vunpack.c.h.b16 %v2111
      %v2352 = vunpack.c.h.b16 %v2112
      %v2353 = vunpack.c.h.b16 %v2113
      %v2354 = vunpack.c.l.b16 %v2114
      %v2355 = vunpack.c.l.b16 %v2115
      %v2356 = vunpack.c.l.b16 %v2116
      %v2357 = vunpack.c.h.b16 %v2114
      %v2358 = vunpack.c.h.b16 %v2115
      %v2359 = vunpack.c.h.b16 %v2116
      %v2360 = vunpack.c.l.b16 %v2117
      %v2361 = vunpack.c.l.b16 %v2118
      %v2362 = vunpack.c.l.b16 %v2119
      %v2363 = vunpack.c.h.b16 %v2117
      %v2364 = vunpack.c.h.b16 %v2118
      %v2365 = vunpack.c.h.b16 %v2119
      %v2366 = vunpack.c.l.b16 %v2120
      %v2367 = vunpack.c.l.b16 %v2121
      %v2368 = vunpack.c.l.b16 %v2122
      %v2369 = vunpack.c.h.b16 %v2120
      %v2370 = vunpack.c.h.b16 %v2121
      %v2371 = vunpack.c.h.b16 %v2122
      %v2372 = vunpack.c.l.b16 %v2123
      %v2373 = vunpack.c.l.b16 %v2124
      %v2374 = vunpack.c.l.b16 %v2125
      %v2375 = vunpack.c.h.b16 %v2123
      %v2376 = vunpack.c.h.b16 %v2124
      %v2377 = vunpack.c.h.b16 %v2125
      %v2378 = vunpack.c.l.b16 %v2126
      %v2379 = vunpack.c.l.b16 %v2127
      %v2380 = vunpack.c.l.b16 %v2128
      %v2381 = vunpack.c.h.b16 %v2126
      %v2382 = vunpack.c.h.b16 %v2127
      %v2383 = vunpack.c.h.b16 %v2128
      %v2384 = vunpack.c.l.b16 %v2129
      %v2385 = vunpack.c.l.b16 %v2130
      %v2386 = vunpack.c.l.b16 %v2131
      %v2387 = vunpack.c.h.b16 %v2129
      %v2388 = vunpack.c.h.b16 %v2130
      %v2389 = vunpack.c.h.b16 %v2131
      %v2390 = vunpack.c.l.b16 %v2132
      %v2391 = vunpack.c.l.b16 %v2133
      %v2392 = vunpack.c.l.b16 %v2134
      %v2393 = vunpack.c.h.b16 %v2132
      %v2394 = vunpack.c.h.b16 %v2133
      %v2395 = vunpack.c.h.b16 %v2134
      %v2396 = vunpack.c.l.b16 %v2135
      %v2397 = vunpack.c.l.b16 %v2136
      %v2398 = vunpack.c.l.b16 %v2137
      %v2399 = vunpack.c.h.b16 %v2135
      %v2400 = vunpack.c.h.b16 %v2136
      %v2401 = vunpack.c.h.b16 %v2137
      %v2402 = vunpack.c.l.b16 %v2138
      %v2403 = vunpack.c.l.b16 %v2139
      %v2404 = vunpack.c.l.b16 %v2140
      %v2405 = vunpack.c.h.b16 %v2138
      %v2406 = vunpack.c.h.b16 %v2139
      %v2407 = vunpack.c.h.b16 %v2140
      %v2408 = vunpack.c.l.b16 %v2141
      %v2409 = vunpack.c.l.b16 %v2142
      %v2410 = vunpack.c.l.b16 %v2143
      %v2411 = vunpack.c.h.b16 %v2141
      %v2412 = vunpack.c.h.b16 %v2142
      %v2413 = vunpack.c.h.b16 %v2143
      %v2414 = vunpack.c.l.b16 %v2144
      %v2415 = vunpack.c.l.b16 %v2145
      %v2416 = vunpack.c.l.b16 %v2146
      %v2417 = vunpack.c.h.b16 %v2144
      %v2418 = vunpack.c.h.b16 %v2145
      %v2419 = vunpack.c.h.b16 %v2146
      %v2420 = vunpack.c.l.b16 %v2147
      %v2421 = vunpack.c.l.b16 %v2148
      %v2422 = vunpack.c.l.b16 %v2149
      %v2423 = vunpack.c.h.b16 %v2147
      %v2424 = vunpack.c.h.b16 %v2148
      %v2425 = vunpack.c.h.b16 %v2149
      %v2426 = vunpack.c.l.b16 %v2150
      %v2427 = vunpack.c.l.b16 %v2151
      %v2428 = vunpack.c.l.b16 %v2152
      %v2429 = vunpack.c.h.b16 %v2150
      %v2430 = vunpack.c.h.b16 %v2151
      %v2431 = vunpack.c.h.b16 %v2152
      %v2432 = vunpack.c.l.b16 %v2153
      %v2433 = vunpack.c.l.b16 %v2154
      %v2434 = vunpack.c.l.b16 %v2155
      %v2435 = vunpack.c.h.b16 %v2153
      %v2436 = vunpack.c.h.b16 %v2154
      %v2437 = vunpack.c.h.b16 %v2155
      %v2438 = vunpack.c.l.b16 %v2156
      %v2439 = vunpack.c.l.b16 %v2157
      %v2440 = vunpack.c.l.b16 %v2158
      %v2441 = vunpack.c.h.b16 %v2156
      %v2442 = vunpack.c.h.b16 %v2157
      %v2443 = vunpack.c.h.b16 %v2158
      %v2444 = vunpack.c.l.b16 %v2159
      %v2445 = vunpack.c.l.b16 %v2160
      %v2446 = vunpack.c.l.b16 %v2161
      %v2447 = vunpack.c.h.b16 %v2159
      %v2448 = vunpack.c.h.b16 %v2160
      %v2449 = vunpack.c.h.b16 %v2161
      %v2450 = vpack.c.b16 %v2259, %v2258
      %v2451 = vpack.c.b16 %v2260, %v2260
      %v2452 = vpack.c.b16 %v2262, %v2261
      %v2453 = vpack.c.b16 %v2263, %v2263
      %v2454 = vpack.c.b16 %v2265, %v2264
      %v2455 = vpack.c.b16 %v2266, %v2266
      %v2456 = vpack.c.b16 %v2268, %v2267
      %v2457 = vpack.c.b16 %v2269, %v2269
      %v2458 = vpack.c.b16 %v2271, %v2270
      %v2459 = vpack.c.b16 %v2272, %v2272
      %v2460 = vpack.c.b16 %v2274, %v2273
      %v2461 = vpack.c.b16 %v2275, %v2275
      %v2462 = vpack.c.b16 %v2277, %v2276
      %v2463 = vpack.c.b16 %v2278, %v2278
      %v2464 = vpack.c.b16 %v2280, %v2279
      %v2465 = vpack.c.b16 %v2281, %v2281
      %v2466 = vpack.c.b16 %v2283, %v2282
      %v2467 = vpack.c.b16 %v2284, %v2284
      %v2468 = vpack.c.b16 %v2286, %v2285
      %v2469 = vpack.c.b16 %v2287, %v2287
      %v2470 = vpack.c.b16 %v2289, %v2288
      %v2471 = vpack.c.b16 %v2290, %v2290
      %v2472 = vpack.c.b16 %v2292, %v2291
      %v2473 = vpack.c.b16 %v2293, %v2293
      %v2474 = vpack.c.b16 %v2295, %v2294
      %v2475 = vpack.c.b16 %v2296, %v2296
      %v2476 = vpack.c.b16 %v2298, %v2297
      %v2477 = vpack.c.b16 %v2299, %v2299
      %v2478 = vpack.c.b16 %v2301, %v2300
      %v2479 = vpack.c.b16 %v2302, %v2302
      %v2480 = vpack.c.b16 %v2304, %v2303
      %v2481 = vpack.c.b16 %v2305, %v2305
      %v2482 = vpack.c.b16 %v2307, %v2306
      %v2483 = vpack.c.b16 %v2308, %v2308
      %v2484 = vpack.c.b16 %v2310, %v2309
      %v2485 = vpack.c.b16 %v2311, %v2311
      %v2486 = vpack.c.b16 %v2313, %v2312
      %v2487 = vpack.c.b16 %v2314, %v2314
      %v2488 = vpack.c.b16 %v2316, %v2315
      %v2489 = vpack.c.b16 %v2317, %v2317
      %v2490 = vpack.c.b16 %v2319, %v2318
      %v2491 = vpack.c.b16 %v2320, %v2320
      %v2492 = vpack.c.b16 %v2322, %v2321
      %v2493 = vpack.c.b16 %v2323, %v2323
      %v2494 = vpack.c.b16 %v2325, %v2324
      %v2495 = vpack.c.b16 %v2326, %v2326
      %v2496 = vpack.c.b16 %v2328, %v2327
      %v2497 = vpack.c.b16 %v2329, %v2329
      %v2498 = vpack.c.b16 %v2331, %v2330
      %v2499 = vpack.c.b16 %v2332, %v2332
      %v2500 = vpack.c.b16 %v2334, %v2333
      %v2501 = vpack.c.b16 %v2335, %v2335
      %v2502 = vpack.c.b16 %v2337, %v2336
      %v2503 = vpack.c.b16 %v2338, %v2338
      %v2504 = vpack.c.b16 %v2340, %v2339
      %v2505 = vpack.c.b16 %v2341, %v2341
      %v2506 = vpack.c.b16 %v2343, %v2342
      %v2507 = vpack.c.b16 %v2344, %v2344
      %v2508 = vpack.c.b16 %v2346, %v2345
      %v2509 = vpack.c.b16 %v2347, %v2347
      %v2510 = vpack.c.b16 %v2349, %v2348
      %v2511 = vpack.c.b16 %v2350, %v2350
      %v2512 = vpack.c.b16 %v2352, %v2351
      %v2513 = vpack.c.b16 %v2353, %v2353
      %v2514 = vpack.c.b16 %v2355, %v2354
      %v2515 = vpack.c.b16 %v2356, %v2356
      %v2516 = vpack.c.b16 %v2358, %v2357
      %v2517 = vpack.c.b16 %v2359, %v2359
      %v2518 = vpack.c.b16 %v2361, %v2360
      %v2519 = vpack.c.b16 %v2362, %v2362
      %v2520 = vpack.c.b16 %v2364, %v2363
      %v2521 = vpack.c.b16 %v2365, %v2365
      %v2522 = vpack.c.b16 %v2367, %v2366
      %v2523 = vpack.c.b16 %v2368, %v2368
      %v2524 = vpack.c.b16 %v2370, %v2369
      %v2525 = vpack.c.b16 %v2371, %v2371
      %v2526 = vpack.c.b16 %v2373, %v2372
      %v2527 = vpack.c.b16 %v2374, %v2374
      %v2528 = vpack.c.b16 %v2376, %v2375
      %v2529 = vpack.c.b16 %v2377, %v2377
      %v2530 = vpack.c.b16 %v2379, %v2378
      %v2531 = vpack.c.b16 %v2380, %v2380
      %v2532 = vpack.c.b16 %v2382, %v2381
      %v2533 = vpack.c.b16 %v2383, %v2383
      %v2534 = vpack.c.b16 %v2385, %v2384
      %v2535 = vpack.c.b16 %v2386, %v2386
      %v2536 = vpack.c.b16 %v2388, %v2387
      %v2537 = vpack.c.b16 %v2389, %v2389
      %v2538 = vpack.c.b16 %v2391, %v2390
      %v2539 = vpack.c.b16 %v2392, %v2392
      %v2540 = vpack.c.b16 %v2394, %v2393
      %v2541 = vpack.c.b16 %v2395, %v2395
      %v2542 = vpack.c.b16 %v2397, %v2396
      %v2543 = vpack.c.b16 %v2398, %v2398
      %v2544 = vpack.c.b16 %v2400, %v2399
      %v2545 = vpack.c.b16 %v2401, %v2401
      %v2546 = vpack.c.b16 %v2403, %v2402
      %v2547 = vpack.c.b16 %v2404, %v2404
      %v2548 = vpack.c.b16 %v2406, %v2405
      %v2549 = vpack.c.b16 %v2407, %v2407
      %v2550 = vpack.c.b16 %v2409, %v2408
      %v2551 = vpack.c.b16 %v2410, %v2410
      %v2552 = vpack.c.b16 %v2412, %v2411
      %v2553 = vpack.c.b16 %v2413, %v2413
      %v2554 = vpack.c.b16 %v2415, %v2414
      %v2555 = vpack.c.b16 %v2416, %v2416
      %v2556 = vpack.c.b16 %v2418, %v2417
      %v2557 = vpack.c.b16 %v2419, %v2419
      %v2558 = vpack.c.b16 %v2421, %v2420
      %v2559 = vpack.c.b16 %v2422, %v2422
      %v2560 = vpack.c.b16 %v2424, %v2423
      %v2561 = vpack.c.b16 %v2425, %v2425
      %v2562 = vpack.c.b16 %v2427, %v2426
      %v2563 = vpack.c.b16 %v2428, %v2428
      %v2564 = vpack.c.b16 %v2430, %v2429
      %v2565 = vpack.c.b16 %v2431, %v2431
      %v2566 = vpack.c.b16 %v2433, %v2432
      %v2567 = vpack.c.b16 %v2434, %v2434
      %v2568 = vpack.c.b16 %v2436, %v2435
      %v2569 = vpack.c.b16 %v2437, %v2437
      %v2570 = vpack.c.b16 %v2439, %v2438
      %v2571 = vpack.c.b16 %v2440, %v2440
      %v2572 = vpack.c.b16 %v2442, %v2441
      %v2573 = vpack.c.b16 %v2443, %v2443
      %v2574 = vpack.c.b16 %v2445, %v2444
      %v2575 = vpack.c.b16 %v2446, %v2446
      %v2576 = vpack.c.b16 %v2448, %v2447
      %v2577 = vpack.c.b16 %v2449, %v2449
      %2706 = vst [vmem:[#allocation8] sm:$0xff] %v2450
      %2707 = vst [vmem:[#allocation8 + $0x8] sm:$0xf] %v2451
      %2708 = vst [vmem:[#allocation8 + $0xc] sm:$0xff] %v2452
      %2709 = vst [vmem:[#allocation8 + $0x14] sm:$0xf] %v2453
      %2710 = vst [vmem:[#allocation8 + $0x18] sm:$0xff] %v2454
      %2711 = vst [vmem:[#allocation8 + $0x20] sm:$0xf] %v2455
      %2712 = vst [vmem:[#allocation8 + $0x24] sm:$0xff] %v2456
      %2713 = vst [vmem:[#allocation8 + $0x2c] sm:$0xf] %v2457
      %2714 = vst [vmem:[#allocation8 + $0x30] sm:$0xff] %v2458
      %2715 = vst [vmem:[#allocation8 + $0x38] sm:$0xf] %v2459
      %2716 = vst [vmem:[#allocation8 + $0x3c] sm:$0xff] %v2460
      %2717 = vst [vmem:[#allocation8 + $0x44] sm:$0xf] %v2461
      %2718 = vst [vmem:[#allocation8 + $0x48] sm:$0xff] %v2462
      %2719 = vst [vmem:[#allocation8 + $0x50] sm:$0xf] %v2463
      %2720 = vst [vmem:[#allocation8 + $0x54] sm:$0xff] %v2464
      %2721 = vst [vmem:[#allocation8 + $0x5c] sm:$0xf] %v2465
      %2722 = vst [vmem:[#allocation8 + $0x60] sm:$0xff] %v2466
      %2723 = vst [vmem:[#allocation8 + $0x68] sm:$0xf] %v2467
      %2724 = vst [vmem:[#allocation8 + $0x6c] sm:$0xff] %v2468
      %2725 = vst [vmem:[#allocation8 + $0x74] sm:$0xf] %v2469
      %2726 = vst [vmem:[#allocation8 + $0x78] sm:$0xff] %v2470
      %2727 = vst [vmem:[#allocation8 + $0x80] sm:$0xf] %v2471
      %2728 = vst [vmem:[#allocation8 + $0x84] sm:$0xff] %v2472
      %2729 = vst [vmem:[#allocation8 + $0x8c] sm:$0xf] %v2473
      %2730 = vst [vmem:[#allocation8 + $0x90] sm:$0xff] %v2474
      %2731 = vst [vmem:[#allocation8 + $0x98] sm:$0xf] %v2475
      %2732 = vst [vmem:[#allocation8 + $0x9c] sm:$0xff] %v2476
      %2733 = vst [vmem:[#allocation8 + $0xa4] sm:$0xf] %v2477
      %2734 = vst [vmem:[#allocation8 + $0xa8] sm:$0xff] %v2478
      %2735 = vst [vmem:[#allocation8 + $0xb0] sm:$0xf] %v2479
      %2736 = vst [vmem:[#allocation8 + $0xb4] sm:$0xff] %v2480
      %2737 = vst [vmem:[#allocation8 + $0xbc] sm:$0xf] %v2481
      %2738 = vst [vmem:[#allocation8 + $0xc0] sm:$0xff] %v2482
      %2739 = vst [vmem:[#allocation8 + $0xc8] sm:$0xf] %v2483
      %2740 = vst [vmem:[#allocation8 + $0xcc] sm:$0xff] %v2484
      %2741 = vst [vmem:[#allocation8 + $0xd4] sm:$0xf] %v2485
      %2742 = vst [vmem:[#allocation8 + $0xd8] sm:$0xff] %v2486
      %2743 = vst [vmem:[#allocation8 + $0xe0] sm:$0xf] %v2487
      %2744 = vst [vmem:[#allocation8 + $0xe4] sm:$0xff] %v2488
      %2745 = vst [vmem:[#allocation8 + $0xec] sm:$0xf] %v2489
      %2746 = vst [vmem:[#allocation8 + $0xf0] sm:$0xff] %v2490
      %2747 = vst [vmem:[#allocation8 + $0xf8] sm:$0xf] %v2491
      %2748 = vst [vmem:[#allocation8 + $0xfc] sm:$0xff] %v2492
      %2749 = vst [vmem:[#allocation8 + $0x104] sm:$0xf] %v2493
      %2750 = vst [vmem:[#allocation8 + $0x108] sm:$0xff] %v2494
      %2751 = vst [vmem:[#allocation8 + $0x110] sm:$0xf] %v2495
      %2752 = vst [vmem:[#allocation8 + $0x114] sm:$0xff] %v2496
      %2753 = vst [vmem:[#allocation8 + $0x11c] sm:$0xf] %v2497
      %2754 = vst [vmem:[#allocation8 + $0x120] sm:$0xff] %v2498
      %2755 = vst [vmem:[#allocation8 + $0x128] sm:$0xf] %v2499
      %2756 = vst [vmem:[#allocation8 + $0x12c] sm:$0xff] %v2500
      %2757 = vst [vmem:[#allocation8 + $0x134] sm:$0xf] %v2501
      %2758 = vst [vmem:[#allocation8 + $0x138] sm:$0xff] %v2502
      %2759 = vst [vmem:[#allocation8 + $0x140] sm:$0xf] %v2503
      %2760 = vst [vmem:[#allocation8 + $0x144] sm:$0xff] %v2504
      %2761 = vst [vmem:[#allocation8 + $0x14c] sm:$0xf] %v2505
      %2762 = vst [vmem:[#allocation8 + $0x150] sm:$0xff] %v2506
      %2763 = vst [vmem:[#allocation8 + $0x158] sm:$0xf] %v2507
      %2764 = vst [vmem:[#allocation8 + $0x15c] sm:$0xff] %v2508
      %2765 = vst [vmem:[#allocation8 + $0x164] sm:$0xf] %v2509
      %2766 = vst [vmem:[#allocation8 + $0x168] sm:$0xff] %v2510
      %2767 = vst [vmem:[#allocation8 + $0x170] sm:$0xf] %v2511
      %2768 = vst [vmem:[#allocation8 + $0x174] sm:$0xff] %v2512
      %2769 = vst [vmem:[#allocation8 + $0x17c] sm:$0xf] %v2513
      %2770 = vst [vmem:[#allocation8 + $0x180] sm:$0xff] %v2514
      %2771 = vst [vmem:[#allocation8 + $0x188] sm:$0xf] %v2515
      %2772 = vst [vmem:[#allocation8 + $0x18c] sm:$0xff] %v2516
      %2773 = vst [vmem:[#allocation8 + $0x194] sm:$0xf] %v2517
      %2774 = vst [vmem:[#allocation8 + $0x198] sm:$0xff] %v2518
      %2775 = vst [vmem:[#allocation8 + $0x1a0] sm:$0xf] %v2519
      %2776 = vst [vmem:[#allocation8 + $0x1a4] sm:$0xff] %v2520
      %2777 = vst [vmem:[#allocation8 + $0x1ac] sm:$0xf] %v2521
      %2778 = vst [vmem:[#allocation8 + $0x1b0] sm:$0xff] %v2522
      %2779 = vst [vmem:[#allocation8 + $0x1b8] sm:$0xf] %v2523
      %2780 = vst [vmem:[#allocation8 + $0x1bc] sm:$0xff] %v2524
      %2781 = vst [vmem:[#allocation8 + $0x1c4] sm:$0xf] %v2525
      %2782 = vst [vmem:[#allocation8 + $0x1c8] sm:$0xff] %v2526
      %2783 = vst [vmem:[#allocation8 + $0x1d0] sm:$0xf] %v2527
      %2784 = vst [vmem:[#allocation8 + $0x1d4] sm:$0xff] %v2528
      %2785 = vst [vmem:[#allocation8 + $0x1dc] sm:$0xf] %v2529
      %2786 = vst [vmem:[#allocation8 + $0x1e0] sm:$0xff] %v2530
      %2787 = vst [vmem:[#allocation8 + $0x1e8] sm:$0xf] %v2531
      %2788 = vst [vmem:[#allocation8 + $0x1ec] sm:$0xff] %v2532
      %2789 = vst [vmem:[#allocation8 + $0x1f4] sm:$0xf] %v2533
      %2790 = vst [vmem:[#allocation8 + $0x1f8] sm:$0xff] %v2534
      %2791 = vst [vmem:[#allocation8 + $0x200] sm:$0xf] %v2535
      %2792 = vst [vmem:[#allocation8 + $0x204] sm:$0xff] %v2536
      %2793 = vst [vmem:[#allocation8 + $0x20c] sm:$0xf] %v2537
      %2794 = vst [vmem:[#allocation8 + $0x210] sm:$0xff] %v2538
      %2795 = vst [vmem:[#allocation8 + $0x218] sm:$0xf] %v2539
      %2796 = vst [vmem:[#allocation8 + $0x21c] sm:$0xff] %v2540
      %2797 = vst [vmem:[#allocation8 + $0x224] sm:$0xf] %v2541
      %2798 = vst [vmem:[#allocation8 + $0x228] sm:$0xff] %v2542
      %2799 = vst [vmem:[#allocation8 + $0x230] sm:$0xf] %v2543
      %2800 = vst [vmem:[#allocation8 + $0x234] sm:$0xff] %v2544
      %2801 = vst [vmem:[#allocation8 + $0x23c] sm:$0xf] %v2545
      %2802 = vst [vmem:[#allocation8 + $0x240] sm:$0xff] %v2546
      %2803 = vst [vmem:[#allocation8 + $0x248] sm:$0xf] %v2547
      %2804 = vst [vmem:[#allocation8 + $0x24c] sm:$0xff] %v2548
      %2805 = vst [vmem:[#allocation8 + $0x254] sm:$0xf] %v2549
      %2806 = vst [vmem:[#allocation8 + $0x258] sm:$0xff] %v2550
      %2807 = vst [vmem:[#allocation8 + $0x260] sm:$0xf] %v2551
      %2808 = vst [vmem:[#allocation8 + $0x264] sm:$0xff] %v2552
      %2809 = vst [vmem:[#allocation8 + $0x26c] sm:$0xf] %v2553
      %2810 = vst [vmem:[#allocation8 + $0x270] sm:$0xff] %v2554
      %2811 = vst [vmem:[#allocation8 + $0x278] sm:$0xf] %v2555
      %2812 = vst [vmem:[#allocation8 + $0x27c] sm:$0xff] %v2556
      %2813 = vst [vmem:[#allocation8 + $0x284] sm:$0xf] %v2557
      %2814 = vst [vmem:[#allocation8 + $0x288] sm:$0xff] %v2558
      %2815 = vst [vmem:[#allocation8 + $0x290] sm:$0xf] %v2559
      %2816 = vst [vmem:[#allocation8 + $0x294] sm:$0xff] %v2560
      %2817 = vst [vmem:[#allocation8 + $0x29c] sm:$0xf] %v2561
      %2818 = vst [vmem:[#allocation8 + $0x2a0] sm:$0xff] %v2562
      %2819 = vst [vmem:[#allocation8 + $0x2a8] sm:$0xf] %v2563
      %2820 = vst [vmem:[#allocation8 + $0x2ac] sm:$0xff] %v2564
      %2821 = vst [vmem:[#allocation8 + $0x2b4] sm:$0xf] %v2565
      %2822 = vst [vmem:[#allocation8 + $0x2b8] sm:$0xff] %v2566
      %2823 = vst [vmem:[#allocation8 + $0x2c0] sm:$0xf] %v2567
      %2824 = vst [vmem:[#allocation8 + $0x2c4] sm:$0xff] %v2568
      %2825 = vst [vmem:[#allocation8 + $0x2cc] sm:$0xf] %v2569
      %2826 = vst [vmem:[#allocation8 + $0x2d0] sm:$0xff] %v2570
      %2827 = vst [vmem:[#allocation8 + $0x2d8] sm:$0xf] %v2571
      %2828 = vst [vmem:[#allocation8 + $0x2dc] sm:$0xff] %v2572
      %2829 = vst [vmem:[#allocation8 + $0x2e4] sm:$0xf] %v2573
      %2830 = vst [vmem:[#allocation8 + $0x2e8] sm:$0xff] %v2574
      %2831 = vst [vmem:[#allocation8 + $0x2f0] sm:$0xf] %v2575
      %2832 = vst [vmem:[#allocation8 + $0x2f4] sm:$0xff] %v2576
      %2833 = vst [vmem:[#allocation8 + $0x2fc] sm:$0xf] %v2577
    $region25: #{tpu_custom_call.1} parent=1 // pred_fallthru
      _
    // Predicated region
    $region26: #{tpu_custom_call.1} parent=1 // pred_check
      _
    $region27: #{tpu_custom_call.1} parent=1 // pred_check_branch
      %2835 = sbr.rel (0) target = $region29
    $region28: #{tpu_custom_call.1} parent=1 // pred_region
      %s2837 = ssub.s32 12288, 12288
      %2838 = vsyncadd [#allocation5], %s2837
      %s2839 = sshll.u32 [#allocation8], 4
      %s2840 = int_to_ptr.vmem [resolvable:$true] %s2839
      %2845 = dma.vmem_to_hbm [thread:$0]  %s2840, 12288, %s2, [#allocation5], 192, 192, 12
    $region29: #{tpu_custom_call.1} parent=1 // pred_fallthru
      _
    // Predicated region
    $region30: #{tpu_custom_call.1} parent=1 // pred_check
      _
    $region31: #{tpu_custom_call.1} parent=1 // pred_check_branch
      %2847 = sbr.rel (0) target = $region33
    $region32: #{tpu_custom_call.1} parent=1 // pred_region
      %2848 = dma.done [#allocation5], 12288
    $region33: #{tpu_custom_call.1} parent=1 // pred_fallthru
      _
    %2849 = vsyncpa [#allocation4], 1
    %2850 = vsyncpa [#allocation7], 1
    %2851 = vsyncpa [#allocation5], 1

</llo_original>
